<compile_context>
chip_gen: v5e
topology: v5e:2x2
jax: 0.10.0
libtpu: 0.0.40
codegen_flags: <defaults>
</compile_context>

<pallas_src>
import jax
import jax.numpy as jnp
from jax.experimental import pallas as pl
from jax.experimental.pallas import tpu as pltpu

HIDDEN = 64


def _make_lstm_kernel(T, B, H):
    def kernel(
        x_ref,        # (T*B, I)  timestep-major flattened input
        wih0_ref,     # (I, 4H)
        whh0_ref,     # (H, 4H)
        b0_ref,       # (1, 4H)   bias_ih_l0 + bias_hh_l0
        w1cat_ref,    # (2H, 4H)  concat([w_ih_l1; w_hh_l1], axis=0)
        b1_ref,       # (1, 4H)   bias_ih_l1 + bias_hh_l1
        wout_ref,     # (H, O)
        bout_ref,     # (1, O)
        out_ref,      # (B, O)    linear head output
        lstm_out_ref, # (B, H)    layer-1 hidden at last timestep
    ):
        # Hoisted non-recurrent projection for layer 0: one MXU pass over all
        # timesteps; bias folded in once.
        xproj = (
            jnp.dot(x_ref[...], wih0_ref[...], preferred_element_type=jnp.float32)
            + b0_ref[...]
        )  # (T*B, 4H)

        whh0 = whh0_ref[...]
        w1cat = w1cat_ref[...]
        b1 = b1_ref[...]

        def activate(gates, c):
            # Full-width EUP activations, then extract the four H-wide gate bands.
            sig = jax.nn.sigmoid(gates)
            th = jnp.tanh(gates)
            i = sig[:, 0 * H:1 * H]
            f = sig[:, 1 * H:2 * H]
            g = th[:, 2 * H:3 * H]
            o = sig[:, 3 * H:4 * H]
            c_new = f * c + i * g
            h_new = o * jnp.tanh(c_new)
            return h_new, c_new

        z = jnp.zeros((B, H), jnp.float32)
        h0, c0, h1, c1 = z, z, z, z

        # Fully unrolled recurrence (T is small and static): single kernel
        # invocation, full scheduler visibility across the dependence chain.
        for t in range(T):
            # Layer 0: only the recurrent matmul remains inside the loop.
            gates0 = xproj[t * B:(t + 1) * B, :] + jnp.dot(
                h0, whh0, preferred_element_type=jnp.float32
            )
            h0, c0 = activate(gates0, c0)
            # Layer 1: one fused (B, 2H) x (2H, 4H) matmul instead of two.
            gates1 = (
                jnp.dot(
                    jnp.concatenate([h0, h1], axis=-1),
                    w1cat,
                    preferred_element_type=jnp.float32,
                )
                + b1
            )
            h1, c1 = activate(gates1, c1)

        lstm_out_ref[...] = h1
        out_ref[...] = (
            jnp.dot(h1, wout_ref[...], preferred_element_type=jnp.float32)
            + bout_ref[...]
        )

    return kernel


@jax.jit
def lstm_forward(x, params):
    B, T, I = x.shape
    H = HIDDEN
    O = params["w_out"].shape[1]

    # (B, T, I) -> (T*B, I): timestep-major so step t is the contiguous row band
    # [t*B, (t+1)*B). Pure layout plumbing, done once in XLA.
    x2d = jnp.swapaxes(x, 0, 1).reshape(T * B, I)
    # Fused layer-1 weight: one MXU push per step instead of two.
    w1_cat = jnp.concatenate([params["w_ih1"], params["w_hh1"]], axis=0)  # (2H, 4H)

    def vmem():
        return pl.BlockSpec(memory_space=pltpu.MemorySpace.VMEM)

    out, lstm_out = pl.pallas_call(
        _make_lstm_kernel(T, B, H),
        out_shape=(
            jax.ShapeDtypeStruct((B, O), jnp.float32),
            jax.ShapeDtypeStruct((B, H), jnp.float32),
        ),
        in_specs=[vmem() for _ in range(8)],
        out_specs=(vmem(), vmem()),
    )(
        x2d,
        params["w_ih0"], params["w_hh0"], params["b0"],
        w1_cat, params["b1"],
        params["w_out"], params["b_out"],
    )
    return out, lstm_out


def init_params(key, input_size, output_size, hidden=HIDDEN):
    """Deterministic init mimicking PyTorch's U(-1/sqrt(H), 1/sqrt(H))."""
    ks = jax.random.split(key, 12)
    bound = 1.0 / jnp.sqrt(jnp.float32(hidden))
    u = lambda k, shape: jax.random.uniform(
        k, shape, jnp.float32, minval=-bound, maxval=bound
    )
    # Weights stored pre-transposed: (in_features, 4H) / (H, out).
    return {
        "w_ih0": u(ks[0], (input_size, 4 * hidden)),
        "w_hh0": u(ks[1], (hidden, 4 * hidden)),
        "b0": u(ks[2], (1, 4 * hidden)) + u(ks[3], (1, 4 * hidden)),
        "w_ih1": u(ks[4], (hidden, 4 * hidden)),
        "w_hh1": u(ks[5], (hidden, 4 * hidden)),
        "b1": u(ks[6], (1, 4 * hidden)) + u(ks[7], (1, 4 * hidden)),
        "w_out": u(ks[8], (hidden, output_size)),
        "b_out": u(ks[9], (1, output_size)),
    }


def reference_forward(x, params):
    """Pure-JAX reference (lax.scan) for correctness check."""
    B, T, I = x.shape
    H = HIDDEN

    def cell(x_in, h, c, w_ih, w_hh, b):
        gates = x_in @ w_ih + h @ w_hh + b
        i = jax.nn.sigmoid(gates[:, 0 * H:1 * H])
        f = jax.nn.sigmoid(gates[:, 1 * H:2 * H])
        g = jnp.tanh(gates[:, 2 * H:3 * H])
        o = jax.nn.sigmoid(gates[:, 3 * H:4 * H])
        c_new = f * c + i * g
        return o * jnp.tanh(c_new), c_new

    def step(carry, x_t):
        h0, c0, h1, c1 = carry
        h0, c0 = cell(x_t, h0, c0, params["w_ih0"], params["w_hh0"], params["b0"])
        h1, c1 = cell(h0, h1, c1, params["w_ih1"], params["w_hh1"], params["b1"])
        return (h0, c0, h1, c1), h1

    z = jnp.zeros((B, H), jnp.float32)
    (_, _, h1, _), _ = jax.lax.scan(step, (z, z, z, z), jnp.swapaxes(x, 0, 1))
    return h1 @ params["w_out"] + params["b_out"], h1


if __name__ == "__main__":
    B, T, I, O = 2, 8, 32, 10  # batch, seq, input_size, output_size

    key = jax.random.PRNGKey(0)
    kx, kp = jax.random.split(key)
    x = jax.random.normal(kx, (B, T, I), jnp.float32)
    params = init_params(kp, I, O)

    out, lstm_out = lstm_forward(x, params)
    jax.block_until_ready((out, lstm_out))

    ref_out, ref_lstm_out = reference_forward(x, params)
    assert out.shape == (B, O) and lstm_out.shape == (B, HIDDEN)
    assert jnp.allclose(out, ref_out, atol=1e-4, rtol=1e-4)
    assert jnp.allclose(lstm_out, ref_lstm_out, atol=1e-4, rtol=1e-4)

    print("KERNEL_OK")
</pallas_src>

<mosaic_0001>
module attributes {stable_mosaic.version = 11 : i64} {
  func.func @kernel(%arg0: memref<16x32xf32, #tpu.memory_space<vmem>>, %arg1: memref<32x256xf32, #tpu.memory_space<vmem>>, %arg2: memref<64x256xf32, #tpu.memory_space<vmem>>, %arg3: memref<1x256xf32, #tpu.memory_space<vmem>>, %arg4: memref<128x256xf32, #tpu.memory_space<vmem>>, %arg5: memref<1x256xf32, #tpu.memory_space<vmem>>, %arg6: memref<64x10xf32, #tpu.memory_space<vmem>>, %arg7: memref<1x10xf32, #tpu.memory_space<vmem>>, %arg8: memref<2x10xf32, #tpu.memory_space<vmem>>, %arg9: memref<2x64xf32, #tpu.memory_space<vmem>>) attributes {dimension_semantics = [], scalar_prefetch = 0 : i64, scratch_operands = 0 : i64, tpu.core_type = #tpu.core_type<tc>} {
    %c0 = arith.constant 0 : index
    %c0_0 = arith.constant 0 : index
    %0 = vector.load %arg0[%c0, %c0_0] : memref<16x32xf32, #tpu.memory_space<vmem>>, vector<16x32xf32>
    %c0_1 = arith.constant 0 : index
    %c0_2 = arith.constant 0 : index
    %1 = vector.load %arg1[%c0_1, %c0_2] : memref<32x256xf32, #tpu.memory_space<vmem>>, vector<32x256xf32>
    %cst = arith.constant dense<0.000000e+00> : vector<16x256xf32>
    %2 = tpu.matmul %0, %1, %cst {dimension_numbers = #tpu.dot_dimension_numbers<[1], [0], [0], [1], [0, 0, 1, 1], [], []>} : vector<16x32xf32>, vector<32x256xf32>, vector<16x256xf32> -> vector<16x256xf32>
    %c0_3 = arith.constant 0 : index
    %c0_4 = arith.constant 0 : index
    %3 = vector.load %arg3[%c0_3, %c0_4] : memref<1x256xf32, #tpu.memory_space<vmem>>, vector<1x256xf32>
    %4 = vector.broadcast %3 : vector<1x256xf32> to vector<16x256xf32>
    %5 = arith.addf %2, %4 : vector<16x256xf32>
    %c0_5 = arith.constant 0 : index
    %c0_6 = arith.constant 0 : index
    %6 = vector.load %arg2[%c0_5, %c0_6] : memref<64x256xf32, #tpu.memory_space<vmem>>, vector<64x256xf32>
    %c0_7 = arith.constant 0 : index
    %c0_8 = arith.constant 0 : index
    %7 = vector.load %arg4[%c0_7, %c0_8] : memref<128x256xf32, #tpu.memory_space<vmem>>, vector<128x256xf32>
    %c0_9 = arith.constant 0 : index
    %c0_10 = arith.constant 0 : index
    %8 = vector.load %arg5[%c0_9, %c0_10] : memref<1x256xf32, #tpu.memory_space<vmem>>, vector<1x256xf32>
    %cst_11 = arith.constant 0.000000e+00 : f32
    %9 = vector.broadcast %cst_11 : f32 to vector<2x64xf32>
    %10 = vector.extract_strided_slice %5 {offsets = [0, 0], sizes = [2, 256], strides = [1, 1]} : vector<16x256xf32> to vector<2x256xf32>
    %cst_12 = arith.constant dense<0.000000e+00> : vector<2x256xf32>
    %11 = tpu.matmul %9, %6, %cst_12 {dimension_numbers = #tpu.dot_dimension_numbers<[1], [0], [0], [1], [0, 0, 1, 1], [], []>} : vector<2x64xf32>, vector<64x256xf32>, vector<2x256xf32> -> vector<2x256xf32>
    %12 = arith.addf %10, %11 : vector<2x256xf32>
    %13 = arith.negf %12 : vector<2x256xf32>
    %14 = math.exp %13 : vector<2x256xf32>
    %cst_13 = arith.constant 1.000000e+00 : f32
    %15 = vector.broadcast %cst_13 : f32 to vector<2x256xf32>
    %16 = arith.addf %15, %14 : vector<2x256xf32>
    %17 = arith.divf %15, %16 : vector<2x256xf32>
    %18 = math.tanh %12 : vector<2x256xf32>
    %19 = vector.extract_strided_slice %17 {offsets = [0, 0], sizes = [2, 64], strides = [1, 1]} : vector<2x256xf32> to vector<2x64xf32>
    %20 = vector.extract_strided_slice %17 {offsets = [0, 64], sizes = [2, 64], strides = [1, 1]} : vector<2x256xf32> to vector<2x64xf32>
    %21 = vector.extract_strided_slice %18 {offsets = [0, 128], sizes = [2, 64], strides = [1, 1]} : vector<2x256xf32> to vector<2x64xf32>
    %22 = vector.extract_strided_slice %17 {offsets = [0, 192], sizes = [2, 64], strides = [1, 1]} : vector<2x256xf32> to vector<2x64xf32>
    %23 = arith.mulf %20, %9 : vector<2x64xf32>
    %24 = arith.mulf %19, %21 : vector<2x64xf32>
    %25 = arith.addf %23, %24 : vector<2x64xf32>
    %26 = math.tanh %25 : vector<2x64xf32>
    %27 = arith.mulf %22, %26 : vector<2x64xf32>
    %28 = tpu.concatenate %27, %9 in 1 : vector<2x64xf32>, vector<2x64xf32> -> vector<2x128xf32>
    %cst_14 = arith.constant dense<0.000000e+00> : vector<2x256xf32>
    %29 = tpu.matmul %28, %7, %cst_14 {dimension_numbers = #tpu.dot_dimension_numbers<[1], [0], [0], [1], [0, 0, 1, 1], [], []>} : vector<2x128xf32>, vector<128x256xf32>, vector<2x256xf32> -> vector<2x256xf32>
    %30 = vector.broadcast %8 : vector<1x256xf32> to vector<2x256xf32>
    %31 = arith.addf %29, %30 : vector<2x256xf32>
    %32 = arith.negf %31 : vector<2x256xf32>
    %33 = math.exp %32 : vector<2x256xf32>
    %cst_15 = arith.constant 1.000000e+00 : f32
    %34 = vector.broadcast %cst_15 : f32 to vector<2x256xf32>
    %35 = arith.addf %34, %33 : vector<2x256xf32>
    %36 = arith.divf %34, %35 : vector<2x256xf32>
    %37 = math.tanh %31 : vector<2x256xf32>
    %38 = vector.extract_strided_slice %36 {offsets = [0, 0], sizes = [2, 64], strides = [1, 1]} : vector<2x256xf32> to vector<2x64xf32>
    %39 = vector.extract_strided_slice %36 {offsets = [0, 64], sizes = [2, 64], strides = [1, 1]} : vector<2x256xf32> to vector<2x64xf32>
    %40 = vector.extract_strided_slice %37 {offsets = [0, 128], sizes = [2, 64], strides = [1, 1]} : vector<2x256xf32> to vector<2x64xf32>
    %41 = vector.extract_strided_slice %36 {offsets = [0, 192], sizes = [2, 64], strides = [1, 1]} : vector<2x256xf32> to vector<2x64xf32>
    %42 = arith.mulf %39, %9 : vector<2x64xf32>
    %43 = arith.mulf %38, %40 : vector<2x64xf32>
    %44 = arith.addf %42, %43 : vector<2x64xf32>
    %45 = math.tanh %44 : vector<2x64xf32>
    %46 = arith.mulf %41, %45 : vector<2x64xf32>
    %47 = vector.extract_strided_slice %5 {offsets = [2, 0], sizes = [2, 256], strides = [1, 1]} : vector<16x256xf32> to vector<2x256xf32>
    %cst_16 = arith.constant dense<0.000000e+00> : vector<2x256xf32>
    %48 = tpu.matmul %27, %6, %cst_16 {dimension_numbers = #tpu.dot_dimension_numbers<[1], [0], [0], [1], [0, 0, 1, 1], [], []>} : vector<2x64xf32>, vector<64x256xf32>, vector<2x256xf32> -> vector<2x256xf32>
    %49 = arith.addf %47, %48 : vector<2x256xf32>
    %50 = arith.negf %49 : vector<2x256xf32>
    %51 = math.exp %50 : vector<2x256xf32>
    %cst_17 = arith.constant 1.000000e+00 : f32
    %52 = vector.broadcast %cst_17 : f32 to vector<2x256xf32>
    %53 = arith.addf %52, %51 : vector<2x256xf32>
    %54 = arith.divf %52, %53 : vector<2x256xf32>
    %55 = math.tanh %49 : vector<2x256xf32>
    %56 = vector.extract_strided_slice %54 {offsets = [0, 0], sizes = [2, 64], strides = [1, 1]} : vector<2x256xf32> to vector<2x64xf32>
    %57 = vector.extract_strided_slice %54 {offsets = [0, 64], sizes = [2, 64], strides = [1, 1]} : vector<2x256xf32> to vector<2x64xf32>
    %58 = vector.extract_strided_slice %55 {offsets = [0, 128], sizes = [2, 64], strides = [1, 1]} : vector<2x256xf32> to vector<2x64xf32>
    %59 = vector.extract_strided_slice %54 {offsets = [0, 192], sizes = [2, 64], strides = [1, 1]} : vector<2x256xf32> to vector<2x64xf32>
    %60 = arith.mulf %57, %25 : vector<2x64xf32>
    %61 = arith.mulf %56, %58 : vector<2x64xf32>
    %62 = arith.addf %60, %61 : vector<2x64xf32>
    %63 = math.tanh %62 : vector<2x64xf32>
    %64 = arith.mulf %59, %63 : vector<2x64xf32>
    %65 = tpu.concatenate %64, %46 in 1 : vector<2x64xf32>, vector<2x64xf32> -> vector<2x128xf32>
    %cst_18 = arith.constant dense<0.000000e+00> : vector<2x256xf32>
    %66 = tpu.matmul %65, %7, %cst_18 {dimension_numbers = #tpu.dot_dimension_numbers<[1], [0], [0], [1], [0, 0, 1, 1], [], []>} : vector<2x128xf32>, vector<128x256xf32>, vector<2x256xf32> -> vector<2x256xf32>
    %67 = vector.broadcast %8 : vector<1x256xf32> to vector<2x256xf32>
    %68 = arith.addf %66, %67 : vector<2x256xf32>
    %69 = arith.negf %68 : vector<2x256xf32>
    %70 = math.exp %69 : vector<2x256xf32>
    %cst_19 = arith.constant 1.000000e+00 : f32
    %71 = vector.broadcast %cst_19 : f32 to vector<2x256xf32>
    %72 = arith.addf %71, %70 : vector<2x256xf32>
    %73 = arith.divf %71, %72 : vector<2x256xf32>
    %74 = math.tanh %68 : vector<2x256xf32>
    %75 = vector.extract_strided_slice %73 {offsets = [0, 0], sizes = [2, 64], strides = [1, 1]} : vector<2x256xf32> to vector<2x64xf32>
    %76 = vector.extract_strided_slice %73 {offsets = [0, 64], sizes = [2, 64], strides = [1, 1]} : vector<2x256xf32> to vector<2x64xf32>
    %77 = vector.extract_strided_slice %74 {offsets = [0, 128], sizes = [2, 64], strides = [1, 1]} : vector<2x256xf32> to vector<2x64xf32>
    %78 = vector.extract_strided_slice %73 {offsets = [0, 192], sizes = [2, 64], strides = [1, 1]} : vector<2x256xf32> to vector<2x64xf32>
    %79 = arith.mulf %76, %44 : vector<2x64xf32>
    %80 = arith.mulf %75, %77 : vector<2x64xf32>
    %81 = arith.addf %79, %80 : vector<2x64xf32>
    %82 = math.tanh %81 : vector<2x64xf32>
    %83 = arith.mulf %78, %82 : vector<2x64xf32>
    %84 = vector.extract_strided_slice %5 {offsets = [4, 0], sizes = [2, 256], strides = [1, 1]} : vector<16x256xf32> to vector<2x256xf32>
    %cst_20 = arith.constant dense<0.000000e+00> : vector<2x256xf32>
    %85 = tpu.matmul %64, %6, %cst_20 {dimension_numbers = #tpu.dot_dimension_numbers<[1], [0], [0], [1], [0, 0, 1, 1], [], []>} : vector<2x64xf32>, vector<64x256xf32>, vector<2x256xf32> -> vector<2x256xf32>
    %86 = arith.addf %84, %85 : vector<2x256xf32>
    %87 = arith.negf %86 : vector<2x256xf32>
    %88 = math.exp %87 : vector<2x256xf32>
    %cst_21 = arith.constant 1.000000e+00 : f32
    %89 = vector.broadcast %cst_21 : f32 to vector<2x256xf32>
    %90 = arith.addf %89, %88 : vector<2x256xf32>
    %91 = arith.divf %89, %90 : vector<2x256xf32>
    %92 = math.tanh %86 : vector<2x256xf32>
    %93 = vector.extract_strided_slice %91 {offsets = [0, 0], sizes = [2, 64], strides = [1, 1]} : vector<2x256xf32> to vector<2x64xf32>
    %94 = vector.extract_strided_slice %91 {offsets = [0, 64], sizes = [2, 64], strides = [1, 1]} : vector<2x256xf32> to vector<2x64xf32>
    %95 = vector.extract_strided_slice %92 {offsets = [0, 128], sizes = [2, 64], strides = [1, 1]} : vector<2x256xf32> to vector<2x64xf32>
    %96 = vector.extract_strided_slice %91 {offsets = [0, 192], sizes = [2, 64], strides = [1, 1]} : vector<2x256xf32> to vector<2x64xf32>
    %97 = arith.mulf %94, %62 : vector<2x64xf32>
    %98 = arith.mulf %93, %95 : vector<2x64xf32>
    %99 = arith.addf %97, %98 : vector<2x64xf32>
    %100 = math.tanh %99 : vector<2x64xf32>
    %101 = arith.mulf %96, %100 : vector<2x64xf32>
    %102 = tpu.concatenate %101, %83 in 1 : vector<2x64xf32>, vector<2x64xf32> -> vector<2x128xf32>
    %cst_22 = arith.constant dense<0.000000e+00> : vector<2x256xf32>
    %103 = tpu.matmul %102, %7, %cst_22 {dimension_numbers = #tpu.dot_dimension_numbers<[1], [0], [0], [1], [0, 0, 1, 1], [], []>} : vector<2x128xf32>, vector<128x256xf32>, vector<2x256xf32> -> vector<2x256xf32>
    %104 = vector.broadcast %8 : vector<1x256xf32> to vector<2x256xf32>
    %105 = arith.addf %103, %104 : vector<2x256xf32>
    %106 = arith.negf %105 : vector<2x256xf32>
    %107 = math.exp %106 : vector<2x256xf32>
    %cst_23 = arith.constant 1.000000e+00 : f32
    %108 = vector.broadcast %cst_23 : f32 to vector<2x256xf32>
    %109 = arith.addf %108, %107 : vector<2x256xf32>
    %110 = arith.divf %108, %109 : vector<2x256xf32>
    %111 = math.tanh %105 : vector<2x256xf32>
    %112 = vector.extract_strided_slice %110 {offsets = [0, 0], sizes = [2, 64], strides = [1, 1]} : vector<2x256xf32> to vector<2x64xf32>
    %113 = vector.extract_strided_slice %110 {offsets = [0, 64], sizes = [2, 64], strides = [1, 1]} : vector<2x256xf32> to vector<2x64xf32>
    %114 = vector.extract_strided_slice %111 {offsets = [0, 128], sizes = [2, 64], strides = [1, 1]} : vector<2x256xf32> to vector<2x64xf32>
    %115 = vector.extract_strided_slice %110 {offsets = [0, 192], sizes = [2, 64], strides = [1, 1]} : vector<2x256xf32> to vector<2x64xf32>
    %116 = arith.mulf %113, %81 : vector<2x64xf32>
    %117 = arith.mulf %112, %114 : vector<2x64xf32>
    %118 = arith.addf %116, %117 : vector<2x64xf32>
    %119 = math.tanh %118 : vector<2x64xf32>
    %120 = arith.mulf %115, %119 : vector<2x64xf32>
    %121 = vector.extract_strided_slice %5 {offsets = [6, 0], sizes = [2, 256], strides = [1, 1]} : vector<16x256xf32> to vector<2x256xf32>
    %cst_24 = arith.constant dense<0.000000e+00> : vector<2x256xf32>
    %122 = tpu.matmul %101, %6, %cst_24 {dimension_numbers = #tpu.dot_dimension_numbers<[1], [0], [0], [1], [0, 0, 1, 1], [], []>} : vector<2x64xf32>, vector<64x256xf32>, vector<2x256xf32> -> vector<2x256xf32>
    %123 = arith.addf %121, %122 : vector<2x256xf32>
    %124 = arith.negf %123 : vector<2x256xf32>
    %125 = math.exp %124 : vector<2x256xf32>
    %cst_25 = arith.constant 1.000000e+00 : f32
    %126 = vector.broadcast %cst_25 : f32 to vector<2x256xf32>
    %127 = arith.addf %126, %125 : vector<2x256xf32>
    %128 = arith.divf %126, %127 : vector<2x256xf32>
    %129 = math.tanh %123 : vector<2x256xf32>
    %130 = vector.extract_strided_slice %128 {offsets = [0, 0], sizes = [2, 64], strides = [1, 1]} : vector<2x256xf32> to vector<2x64xf32>
    %131 = vector.extract_strided_slice %128 {offsets = [0, 64], sizes = [2, 64], strides = [1, 1]} : vector<2x256xf32> to vector<2x64xf32>
    %132 = vector.extract_strided_slice %129 {offsets = [0, 128], sizes = [2, 64], strides = [1, 1]} : vector<2x256xf32> to vector<2x64xf32>
    %133 = vector.extract_strided_slice %128 {offsets = [0, 192], sizes = [2, 64], strides = [1, 1]} : vector<2x256xf32> to vector<2x64xf32>
    %134 = arith.mulf %131, %99 : vector<2x64xf32>
    %135 = arith.mulf %130, %132 : vector<2x64xf32>
    %136 = arith.addf %134, %135 : vector<2x64xf32>
    %137 = math.tanh %136 : vector<2x64xf32>
    %138 = arith.mulf %133, %137 : vector<2x64xf32>
    %139 = tpu.concatenate %138, %120 in 1 : vector<2x64xf32>, vector<2x64xf32> -> vector<2x128xf32>
    %cst_26 = arith.constant dense<0.000000e+00> : vector<2x256xf32>
    %140 = tpu.matmul %139, %7, %cst_26 {dimension_numbers = #tpu.dot_dimension_numbers<[1], [0], [0], [1], [0, 0, 1, 1], [], []>} : vector<2x128xf32>, vector<128x256xf32>, vector<2x256xf32> -> vector<2x256xf32>
    %141 = vector.broadcast %8 : vector<1x256xf32> to vector<2x256xf32>
    %142 = arith.addf %140, %141 : vector<2x256xf32>
    %143 = arith.negf %142 : vector<2x256xf32>
    %144 = math.exp %143 : vector<2x256xf32>
    %cst_27 = arith.constant 1.000000e+00 : f32
    %145 = vector.broadcast %cst_27 : f32 to vector<2x256xf32>
    %146 = arith.addf %145, %144 : vector<2x256xf32>
    %147 = arith.divf %145, %146 : vector<2x256xf32>
    %148 = math.tanh %142 : vector<2x256xf32>
    %149 = vector.extract_strided_slice %147 {offsets = [0, 0], sizes = [2, 64], strides = [1, 1]} : vector<2x256xf32> to vector<2x64xf32>
    %150 = vector.extract_strided_slice %147 {offsets = [0, 64], sizes = [2, 64], strides = [1, 1]} : vector<2x256xf32> to vector<2x64xf32>
    %151 = vector.extract_strided_slice %148 {offsets = [0, 128], sizes = [2, 64], strides = [1, 1]} : vector<2x256xf32> to vector<2x64xf32>
    %152 = vector.extract_strided_slice %147 {offsets = [0, 192], sizes = [2, 64], strides = [1, 1]} : vector<2x256xf32> to vector<2x64xf32>
    %153 = arith.mulf %150, %118 : vector<2x64xf32>
    %154 = arith.mulf %149, %151 : vector<2x64xf32>
    %155 = arith.addf %153, %154 : vector<2x64xf32>
    %156 = math.tanh %155 : vector<2x64xf32>
    %157 = arith.mulf %152, %156 : vector<2x64xf32>
    %158 = vector.extract_strided_slice %5 {offsets = [8, 0], sizes = [2, 256], strides = [1, 1]} : vector<16x256xf32> to vector<2x256xf32>
    %cst_28 = arith.constant dense<0.000000e+00> : vector<2x256xf32>
    %159 = tpu.matmul %138, %6, %cst_28 {dimension_numbers = #tpu.dot_dimension_numbers<[1], [0], [0], [1], [0, 0, 1, 1], [], []>} : vector<2x64xf32>, vector<64x256xf32>, vector<2x256xf32> -> vector<2x256xf32>
    %160 = arith.addf %158, %159 : vector<2x256xf32>
    %161 = arith.negf %160 : vector<2x256xf32>
    %162 = math.exp %161 : vector<2x256xf32>
    %cst_29 = arith.constant 1.000000e+00 : f32
    %163 = vector.broadcast %cst_29 : f32 to vector<2x256xf32>
    %164 = arith.addf %163, %162 : vector<2x256xf32>
    %165 = arith.divf %163, %164 : vector<2x256xf32>
    %166 = math.tanh %160 : vector<2x256xf32>
    %167 = vector.extract_strided_slice %165 {offsets = [0, 0], sizes = [2, 64], strides = [1, 1]} : vector<2x256xf32> to vector<2x64xf32>
    %168 = vector.extract_strided_slice %165 {offsets = [0, 64], sizes = [2, 64], strides = [1, 1]} : vector<2x256xf32> to vector<2x64xf32>
    %169 = vector.extract_strided_slice %166 {offsets = [0, 128], sizes = [2, 64], strides = [1, 1]} : vector<2x256xf32> to vector<2x64xf32>
    %170 = vector.extract_strided_slice %165 {offsets = [0, 192], sizes = [2, 64], strides = [1, 1]} : vector<2x256xf32> to vector<2x64xf32>
    %171 = arith.mulf %168, %136 : vector<2x64xf32>
    %172 = arith.mulf %167, %169 : vector<2x64xf32>
    %173 = arith.addf %171, %172 : vector<2x64xf32>
    %174 = math.tanh %173 : vector<2x64xf32>
    %175 = arith.mulf %170, %174 : vector<2x64xf32>
    %176 = tpu.concatenate %175, %157 in 1 : vector<2x64xf32>, vector<2x64xf32> -> vector<2x128xf32>
    %cst_30 = arith.constant dense<0.000000e+00> : vector<2x256xf32>
    %177 = tpu.matmul %176, %7, %cst_30 {dimension_numbers = #tpu.dot_dimension_numbers<[1], [0], [0], [1], [0, 0, 1, 1], [], []>} : vector<2x128xf32>, vector<128x256xf32>, vector<2x256xf32> -> vector<2x256xf32>
    %178 = vector.broadcast %8 : vector<1x256xf32> to vector<2x256xf32>
    %179 = arith.addf %177, %178 : vector<2x256xf32>
    %180 = arith.negf %179 : vector<2x256xf32>
    %181 = math.exp %180 : vector<2x256xf32>
    %cst_31 = arith.constant 1.000000e+00 : f32
    %182 = vector.broadcast %cst_31 : f32 to vector<2x256xf32>
    %183 = arith.addf %182, %181 : vector<2x256xf32>
    %184 = arith.divf %182, %183 : vector<2x256xf32>
    %185 = math.tanh %179 : vector<2x256xf32>
    %186 = vector.extract_strided_slice %184 {offsets = [0, 0], sizes = [2, 64], strides = [1, 1]} : vector<2x256xf32> to vector<2x64xf32>
    %187 = vector.extract_strided_slice %184 {offsets = [0, 64], sizes = [2, 64], strides = [1, 1]} : vector<2x256xf32> to vector<2x64xf32>
    %188 = vector.extract_strided_slice %185 {offsets = [0, 128], sizes = [2, 64], strides = [1, 1]} : vector<2x256xf32> to vector<2x64xf32>
    %189 = vector.extract_strided_slice %184 {offsets = [0, 192], sizes = [2, 64], strides = [1, 1]} : vector<2x256xf32> to vector<2x64xf32>
    %190 = arith.mulf %187, %155 : vector<2x64xf32>
    %191 = arith.mulf %186, %188 : vector<2x64xf32>
    %192 = arith.addf %190, %191 : vector<2x64xf32>
    %193 = math.tanh %192 : vector<2x64xf32>
    %194 = arith.mulf %189, %193 : vector<2x64xf32>
    %195 = vector.extract_strided_slice %5 {offsets = [10, 0], sizes = [2, 256], strides = [1, 1]} : vector<16x256xf32> to vector<2x256xf32>
    %cst_32 = arith.constant dense<0.000000e+00> : vector<2x256xf32>
    %196 = tpu.matmul %175, %6, %cst_32 {dimension_numbers = #tpu.dot_dimension_numbers<[1], [0], [0], [1], [0, 0, 1, 1], [], []>} : vector<2x64xf32>, vector<64x256xf32>, vector<2x256xf32> -> vector<2x256xf32>
    %197 = arith.addf %195, %196 : vector<2x256xf32>
    %198 = arith.negf %197 : vector<2x256xf32>
    %199 = math.exp %198 : vector<2x256xf32>
    %cst_33 = arith.constant 1.000000e+00 : f32
    %200 = vector.broadcast %cst_33 : f32 to vector<2x256xf32>
    %201 = arith.addf %200, %199 : vector<2x256xf32>
    %202 = arith.divf %200, %201 : vector<2x256xf32>
    %203 = math.tanh %197 : vector<2x256xf32>
    %204 = vector.extract_strided_slice %202 {offsets = [0, 0], sizes = [2, 64], strides = [1, 1]} : vector<2x256xf32> to vector<2x64xf32>
    %205 = vector.extract_strided_slice %202 {offsets = [0, 64], sizes = [2, 64], strides = [1, 1]} : vector<2x256xf32> to vector<2x64xf32>
    %206 = vector.extract_strided_slice %203 {offsets = [0, 128], sizes = [2, 64], strides = [1, 1]} : vector<2x256xf32> to vector<2x64xf32>
    %207 = vector.extract_strided_slice %202 {offsets = [0, 192], sizes = [2, 64], strides = [1, 1]} : vector<2x256xf32> to vector<2x64xf32>
    %208 = arith.mulf %205, %173 : vector<2x64xf32>
    %209 = arith.mulf %204, %206 : vector<2x64xf32>
    %210 = arith.addf %208, %209 : vector<2x64xf32>
    %211 = math.tanh %210 : vector<2x64xf32>
    %212 = arith.mulf %207, %211 : vector<2x64xf32>
    %213 = tpu.concatenate %212, %194 in 1 : vector<2x64xf32>, vector<2x64xf32> -> vector<2x128xf32>
    %cst_34 = arith.constant dense<0.000000e+00> : vector<2x256xf32>
    %214 = tpu.matmul %213, %7, %cst_34 {dimension_numbers = #tpu.dot_dimension_numbers<[1], [0], [0], [1], [0, 0, 1, 1], [], []>} : vector<2x128xf32>, vector<128x256xf32>, vector<2x256xf32> -> vector<2x256xf32>
    %215 = vector.broadcast %8 : vector<1x256xf32> to vector<2x256xf32>
    %216 = arith.addf %214, %215 : vector<2x256xf32>
    %217 = arith.negf %216 : vector<2x256xf32>
    %218 = math.exp %217 : vector<2x256xf32>
    %cst_35 = arith.constant 1.000000e+00 : f32
    %219 = vector.broadcast %cst_35 : f32 to vector<2x256xf32>
    %220 = arith.addf %219, %218 : vector<2x256xf32>
    %221 = arith.divf %219, %220 : vector<2x256xf32>
    %222 = math.tanh %216 : vector<2x256xf32>
    %223 = vector.extract_strided_slice %221 {offsets = [0, 0], sizes = [2, 64], strides = [1, 1]} : vector<2x256xf32> to vector<2x64xf32>
    %224 = vector.extract_strided_slice %221 {offsets = [0, 64], sizes = [2, 64], strides = [1, 1]} : vector<2x256xf32> to vector<2x64xf32>
    %225 = vector.extract_strided_slice %222 {offsets = [0, 128], sizes = [2, 64], strides = [1, 1]} : vector<2x256xf32> to vector<2x64xf32>
    %226 = vector.extract_strided_slice %221 {offsets = [0, 192], sizes = [2, 64], strides = [1, 1]} : vector<2x256xf32> to vector<2x64xf32>
    %227 = arith.mulf %224, %192 : vector<2x64xf32>
    %228 = arith.mulf %223, %225 : vector<2x64xf32>
    %229 = arith.addf %227, %228 : vector<2x64xf32>
    %230 = math.tanh %229 : vector<2x64xf32>
    %231 = arith.mulf %226, %230 : vector<2x64xf32>
    %232 = vector.extract_strided_slice %5 {offsets = [12, 0], sizes = [2, 256], strides = [1, 1]} : vector<16x256xf32> to vector<2x256xf32>
    %cst_36 = arith.constant dense<0.000000e+00> : vector<2x256xf32>
    %233 = tpu.matmul %212, %6, %cst_36 {dimension_numbers = #tpu.dot_dimension_numbers<[1], [0], [0], [1], [0, 0, 1, 1], [], []>} : vector<2x64xf32>, vector<64x256xf32>, vector<2x256xf32> -> vector<2x256xf32>
    %234 = arith.addf %232, %233 : vector<2x256xf32>
    %235 = arith.negf %234 : vector<2x256xf32>
    %236 = math.exp %235 : vector<2x256xf32>
    %cst_37 = arith.constant 1.000000e+00 : f32
    %237 = vector.broadcast %cst_37 : f32 to vector<2x256xf32>
    %238 = arith.addf %237, %236 : vector<2x256xf32>
    %239 = arith.divf %237, %238 : vector<2x256xf32>
    %240 = math.tanh %234 : vector<2x256xf32>
    %241 = vector.extract_strided_slice %239 {offsets = [0, 0], sizes = [2, 64], strides = [1, 1]} : vector<2x256xf32> to vector<2x64xf32>
    %242 = vector.extract_strided_slice %239 {offsets = [0, 64], sizes = [2, 64], strides = [1, 1]} : vector<2x256xf32> to vector<2x64xf32>
    %243 = vector.extract_strided_slice %240 {offsets = [0, 128], sizes = [2, 64], strides = [1, 1]} : vector<2x256xf32> to vector<2x64xf32>
    %244 = vector.extract_strided_slice %239 {offsets = [0, 192], sizes = [2, 64], strides = [1, 1]} : vector<2x256xf32> to vector<2x64xf32>
    %245 = arith.mulf %242, %210 : vector<2x64xf32>
    %246 = arith.mulf %241, %243 : vector<2x64xf32>
    %247 = arith.addf %245, %246 : vector<2x64xf32>
    %248 = math.tanh %247 : vector<2x64xf32>
    %249 = arith.mulf %244, %248 : vector<2x64xf32>
    %250 = tpu.concatenate %249, %231 in 1 : vector<2x64xf32>, vector<2x64xf32> -> vector<2x128xf32>
    %cst_38 = arith.constant dense<0.000000e+00> : vector<2x256xf32>
    %251 = tpu.matmul %250, %7, %cst_38 {dimension_numbers = #tpu.dot_dimension_numbers<[1], [0], [0], [1], [0, 0, 1, 1], [], []>} : vector<2x128xf32>, vector<128x256xf32>, vector<2x256xf32> -> vector<2x256xf32>
    %252 = vector.broadcast %8 : vector<1x256xf32> to vector<2x256xf32>
    %253 = arith.addf %251, %252 : vector<2x256xf32>
    %254 = arith.negf %253 : vector<2x256xf32>
    %255 = math.exp %254 : vector<2x256xf32>
    %cst_39 = arith.constant 1.000000e+00 : f32
    %256 = vector.broadcast %cst_39 : f32 to vector<2x256xf32>
    %257 = arith.addf %256, %255 : vector<2x256xf32>
    %258 = arith.divf %256, %257 : vector<2x256xf32>
    %259 = math.tanh %253 : vector<2x256xf32>
    %260 = vector.extract_strided_slice %258 {offsets = [0, 0], sizes = [2, 64], strides = [1, 1]} : vector<2x256xf32> to vector<2x64xf32>
    %261 = vector.extract_strided_slice %258 {offsets = [0, 64], sizes = [2, 64], strides = [1, 1]} : vector<2x256xf32> to vector<2x64xf32>
    %262 = vector.extract_strided_slice %259 {offsets = [0, 128], sizes = [2, 64], strides = [1, 1]} : vector<2x256xf32> to vector<2x64xf32>
    %263 = vector.extract_strided_slice %258 {offsets = [0, 192], sizes = [2, 64], strides = [1, 1]} : vector<2x256xf32> to vector<2x64xf32>
    %264 = arith.mulf %261, %229 : vector<2x64xf32>
    %265 = arith.mulf %260, %262 : vector<2x64xf32>
    %266 = arith.addf %264, %265 : vector<2x64xf32>
    %267 = math.tanh %266 : vector<2x64xf32>
    %268 = arith.mulf %263, %267 : vector<2x64xf32>
    %269 = vector.extract_strided_slice %5 {offsets = [14, 0], sizes = [2, 256], strides = [1, 1]} : vector<16x256xf32> to vector<2x256xf32>
    %cst_40 = arith.constant dense<0.000000e+00> : vector<2x256xf32>
    %270 = tpu.matmul %249, %6, %cst_40 {dimension_numbers = #tpu.dot_dimension_numbers<[1], [0], [0], [1], [0, 0, 1, 1], [], []>} : vector<2x64xf32>, vector<64x256xf32>, vector<2x256xf32> -> vector<2x256xf32>
    %271 = arith.addf %269, %270 : vector<2x256xf32>
    %272 = arith.negf %271 : vector<2x256xf32>
    %273 = math.exp %272 : vector<2x256xf32>
    %cst_41 = arith.constant 1.000000e+00 : f32
    %274 = vector.broadcast %cst_41 : f32 to vector<2x256xf32>
    %275 = arith.addf %274, %273 : vector<2x256xf32>
    %276 = arith.divf %274, %275 : vector<2x256xf32>
    %277 = math.tanh %271 : vector<2x256xf32>
    %278 = vector.extract_strided_slice %276 {offsets = [0, 0], sizes = [2, 64], strides = [1, 1]} : vector<2x256xf32> to vector<2x64xf32>
    %279 = vector.extract_strided_slice %276 {offsets = [0, 64], sizes = [2, 64], strides = [1, 1]} : vector<2x256xf32> to vector<2x64xf32>
    %280 = vector.extract_strided_slice %277 {offsets = [0, 128], sizes = [2, 64], strides = [1, 1]} : vector<2x256xf32> to vector<2x64xf32>
    %281 = vector.extract_strided_slice %276 {offsets = [0, 192], sizes = [2, 64], strides = [1, 1]} : vector<2x256xf32> to vector<2x64xf32>
    %282 = arith.mulf %279, %247 : vector<2x64xf32>
    %283 = arith.mulf %278, %280 : vector<2x64xf32>
    %284 = arith.addf %282, %283 : vector<2x64xf32>
    %285 = math.tanh %284 : vector<2x64xf32>
    %286 = arith.mulf %281, %285 : vector<2x64xf32>
    %287 = tpu.concatenate %286, %268 in 1 : vector<2x64xf32>, vector<2x64xf32> -> vector<2x128xf32>
    %cst_42 = arith.constant dense<0.000000e+00> : vector<2x256xf32>
    %288 = tpu.matmul %287, %7, %cst_42 {dimension_numbers = #tpu.dot_dimension_numbers<[1], [0], [0], [1], [0, 0, 1, 1], [], []>} : vector<2x128xf32>, vector<128x256xf32>, vector<2x256xf32> -> vector<2x256xf32>
    %289 = vector.broadcast %8 : vector<1x256xf32> to vector<2x256xf32>
    %290 = arith.addf %288, %289 : vector<2x256xf32>
    %291 = arith.negf %290 : vector<2x256xf32>
    %292 = math.exp %291 : vector<2x256xf32>
    %cst_43 = arith.constant 1.000000e+00 : f32
    %293 = vector.broadcast %cst_43 : f32 to vector<2x256xf32>
    %294 = arith.addf %293, %292 : vector<2x256xf32>
    %295 = arith.divf %293, %294 : vector<2x256xf32>
    %296 = math.tanh %290 : vector<2x256xf32>
    %297 = vector.extract_strided_slice %295 {offsets = [0, 0], sizes = [2, 64], strides = [1, 1]} : vector<2x256xf32> to vector<2x64xf32>
    %298 = vector.extract_strided_slice %295 {offsets = [0, 64], sizes = [2, 64], strides = [1, 1]} : vector<2x256xf32> to vector<2x64xf32>
    %299 = vector.extract_strided_slice %296 {offsets = [0, 128], sizes = [2, 64], strides = [1, 1]} : vector<2x256xf32> to vector<2x64xf32>
    %300 = vector.extract_strided_slice %295 {offsets = [0, 192], sizes = [2, 64], strides = [1, 1]} : vector<2x256xf32> to vector<2x64xf32>
    %301 = arith.mulf %298, %266 : vector<2x64xf32>
    %302 = arith.mulf %297, %299 : vector<2x64xf32>
    %303 = arith.addf %301, %302 : vector<2x64xf32>
    %304 = math.tanh %303 : vector<2x64xf32>
    %305 = arith.mulf %300, %304 : vector<2x64xf32>
    %c0_44 = arith.constant 0 : index
    %c0_45 = arith.constant 0 : index
    %306 = vector.load %arg9[%c0_44, %c0_45] : memref<2x64xf32, #tpu.memory_space<vmem>>, vector<2x64xf32>
    tpu.vector_store %arg9[%c0_44, %c0_45], %305 {strides = array<i32>} : memref<2x64xf32, #tpu.memory_space<vmem>>, vector<2x64xf32>,
    %c0_46 = arith.constant 0 : index
    %c0_47 = arith.constant 0 : index
    %307 = vector.load %arg6[%c0_46, %c0_47] : memref<64x10xf32, #tpu.memory_space<vmem>>, vector<64x10xf32>
    %cst_48 = arith.constant dense<0.000000e+00> : vector<2x10xf32>
    %308 = tpu.matmul %305, %307, %cst_48 {dimension_numbers = #tpu.dot_dimension_numbers<[1], [0], [0], [1], [0, 0, 1, 1], [], []>} : vector<2x64xf32>, vector<64x10xf32>, vector<2x10xf32> -> vector<2x10xf32>
    %c0_49 = arith.constant 0 : index
    %c0_50 = arith.constant 0 : index
    %309 = vector.load %arg7[%c0_49, %c0_50] : memref<1x10xf32, #tpu.memory_space<vmem>>, vector<1x10xf32>
    %310 = vector.broadcast %309 : vector<1x10xf32> to vector<2x10xf32>
    %311 = arith.addf %308, %310 : vector<2x10xf32>
    %c0_51 = arith.constant 0 : index
    %c0_52 = arith.constant 0 : index
    %312 = vector.load %arg8[%c0_51, %c0_52] : memref<2x10xf32, #tpu.memory_space<vmem>>, vector<2x10xf32>
    tpu.vector_store %arg8[%c0_51, %c0_52], %311 {strides = array<i32>} : memref<2x10xf32, #tpu.memory_space<vmem>>, vector<2x10xf32>,
    return
  }
}

</mosaic_0001>

<llo_original>
// kernel: lstm_forward.1
$region0: #{lstm_forward.1}
  #allocation0 [shape = 'u32[]', space=smem, size = 0x4, offset = 0x4, fixed_abs, tag = 'smem constant byte address 0x4 - core index']
  #allocation1 [shape = 'u32[72,128]{1,0:T(1,128)}', space=vmem, size = 0x9000, scoped, tag = 'internal scratch']
  %s0 = inlined_call_operand.vmem [shape: f32[16,32], index: 0, kind: input, shape index: {}]
  %s1 = inlined_call_operand.vmem [shape: f32[32,256], index: 1, kind: input, shape index: {}]
  %s2 = inlined_call_operand.vmem [shape: f32[64,256], index: 2, kind: input, shape index: {}]
  %s3 = inlined_call_operand.vmem [shape: f32[1,256], index: 3, kind: input, shape index: {}]
  %s4 = inlined_call_operand.vmem [shape: f32[128,256], index: 4, kind: input, shape index: {}]
  %s5 = inlined_call_operand.vmem [shape: f32[1,256], index: 5, kind: input, shape index: {}]
  %s6 = inlined_call_operand.vmem [shape: f32[64,10], index: 6, kind: input, shape index: {}]
  %s7 = inlined_call_operand.vmem [shape: f32[1,10], index: 7, kind: input, shape index: {}]
  %s8 = inlined_call_operand.hbm [shape: f32[2,10], index: 8, kind: output, shape index: {0}]
  %s9 = inlined_call_operand.hbm [shape: f32[2,64], index: 9, kind: output, shape index: {1}]
  %10 = xla_tuple %s8, %s9
  %s11 = sld [smem:[#allocation0]]
  $region50: #{lstm_forward.1} parent=0
    _
  %s13 = ssub.s32 1, %s11
  %s14 = scalar_select 0, %s13, %s11
  $region1: #{lstm_forward.1} parent=0
    #allocation2 [shape = 'u8[1024]{0}', space=vmem, size = 0x400, scoped, tag = 'output window, operand 0, single buffered']
    #allocation3 [shape = 's32[1]{0}', space=sflag, size = 0x4, scoped, tag = 'scoped memory for lstm_forward.1']
    #allocation4 [shape = 'u8[1024]{0}', space=vmem, size = 0x400, scoped, tag = 'output window, operand 1, single buffered']
    #allocation5 [shape = 's32[1]{0}', space=sflag, size = 0x4, scoped, tag = 'scoped memory for lstm_forward.1']
    %15 = vsyncpa [#allocation3], 0
    %16 = vsyncpa [#allocation5], 0
    // Predicated region
    $region2: #{lstm_forward.1} parent=1 // pred_check
      _
    $region3: #{lstm_forward.1} parent=1 // pred_check_branch
      %18 = sbr.rel (0) target = $region5
    $region4: #{lstm_forward.1} parent=1 // pred_region
      _
    $region5: #{lstm_forward.1} parent=1 // pred_fallthru
      _
    // Predicated region
    $region6: #{lstm_forward.1} parent=1 // pred_check
      _
    $region7: #{lstm_forward.1} parent=1 // pred_check_branch
      %20 = sbr.rel (0) target = $region9
    $region8: #{lstm_forward.1} parent=1 // pred_region
      _
    $region9: #{lstm_forward.1} parent=1 // pred_fallthru
      _
    // Predicated region
    $region10: #{lstm_forward.1} parent=1 // pred_check
      _
    $region11: #{lstm_forward.1} parent=1 // pred_check_branch
      %22 = sbr.rel (0) target = $region13
    $region12: #{lstm_forward.1} parent=1 // pred_region
      _
    $region13: #{lstm_forward.1} parent=1 // pred_fallthru
      _
    // Predicated region
    $region14: #{lstm_forward.1} parent=1 // pred_check
      _
    $region15: #{lstm_forward.1} parent=1 // pred_check_branch
      %24 = sbr.rel (0) target = $region17
    $region16: #{lstm_forward.1} parent=1 // pred_region
      _
    $region17: #{lstm_forward.1} parent=1 // pred_fallthru
      _
    // Predicated region
    $region18: #{lstm_forward.1} parent=1 // pred_check
      _
    $region19: #{lstm_forward.1} parent=1 // pred_check_branch
      %26 = sbr.rel (0) target = $region21
    $region20: #{lstm_forward.1} parent=1 // pred_region
      _
    $region21: #{lstm_forward.1} parent=1 // pred_fallthru
      _
    // Predicated region
    $region22: #{lstm_forward.1} parent=1 // pred_check
      _
    $region23: #{lstm_forward.1} parent=1 // pred_check_branch
      %28 = sbr.rel (0) target = $region25
    $region24: #{lstm_forward.1} parent=1 // pred_region
      _
    $region25: #{lstm_forward.1} parent=1 // pred_fallthru
      _
    // Predicated region
    $region26: #{lstm_forward.1} parent=1 // pred_check
      _
    $region27: #{lstm_forward.1} parent=1 // pred_check_branch
      %30 = sbr.rel (0) target = $region29
    $region28: #{lstm_forward.1} parent=1 // pred_region
      _
    $region29: #{lstm_forward.1} parent=1 // pred_fallthru
      _
    // Predicated region
    $region30: #{lstm_forward.1} parent=1 // pred_check
      _
    $region31: #{lstm_forward.1} parent=1 // pred_check_branch
      %32 = sbr.rel (0) target = $region33
    $region32: #{lstm_forward.1} parent=1 // pred_region
      _
    $region33: #{lstm_forward.1} parent=1 // pred_fallthru
      _
    %v33 = vld [vmem:[%s0] sm:$0xff]
    %v34 = vld [vmem:[%s0 + $0x8] sm:$0xff]
    %v35 = vld [vmem:[%s1] sm:$0xff]
    %v36 = vld [vmem:[%s1 + $0x8] sm:$0xff]
    %v37 = vld [vmem:[%s1 + $0x10] sm:$0xff]
    %v38 = vld [vmem:[%s1 + $0x18] sm:$0xff]
    %v39 = vld [vmem:[%s1 + $0x20] sm:$0xff]
    %v40 = vld [vmem:[%s1 + $0x28] sm:$0xff]
    %v41 = vld [vmem:[%s1 + $0x30] sm:$0xff]
    %v42 = vld [vmem:[%s1 + $0x38] sm:$0xff]
    %v43 = vld [vmem:[%s3] sm:$0x3]
    %v45 = vperm.slane %v43, 0
    %v46 = vperm.slane %v43, 1
    %vm49 = vcmask 261120
    %v51 = vsel %vm49, %v33, 0
    %v54 = vsel %vm49, %v34, 0
    %56 = vmatpush.msra.mxu0 0.0
    %57 = vmatpush.msra.mxu0 0.0
    %58 = vmatpush.msra.mxu0 0.0
    %59 = vmatpush.msra.mxu0 0.0
    %60 = vmatpush.msra.mxu0 0.0
    %61 = vmatpush.msra.mxu0 0.0
    %62 = vmatpush.msra.mxu0 0.0
    %63 = vmatpush.msra.mxu0 0.0
    %64 = vmatpush.msra.mxu0 0.0
    %65 = vmatpush.msra.mxu0 0.0
    %66 = vmatpush.msra.mxu0 0.0
    %67 = vmatpush.msra.mxu0 0.0
    %68 = vmatpush.msra.mxu0 %v41
    %69 = vmatpush.msra.mxu0 %v39
    %70 = vmatpush.msra.mxu0 %v37
    %71 = vmatpush.msra.mxu0 %v35
    %72 = vmatmul.f32.gmra.mxu0 %v51
    %v73 = vpop.f32.mrf.mxu0
    %v74 = vadd.f32 %v45, %v73
    %75 = vmatmul.f32.gmra.mxu0 %v54
    %v76 = vpop.f32.mrf.mxu0
    %v77 = vadd.f32 %v45, %v76
    %78 = vdwg.mxu0
    %79 = vmatpush.msra.mxu0 0.0
    %80 = vmatpush.msra.mxu0 0.0
    %81 = vmatpush.msra.mxu0 0.0
    %82 = vmatpush.msra.mxu0 0.0
    %83 = vmatpush.msra.mxu0 0.0
    %84 = vmatpush.msra.mxu0 0.0
    %85 = vmatpush.msra.mxu0 0.0
    %86 = vmatpush.msra.mxu0 0.0
    %87 = vmatpush.msra.mxu0 0.0
    %88 = vmatpush.msra.mxu0 0.0
    %89 = vmatpush.msra.mxu0 0.0
    %90 = vmatpush.msra.mxu0 0.0
    %91 = vmatpush.msra.mxu0 %v42
    %92 = vmatpush.msra.mxu0 %v40
    %93 = vmatpush.msra.mxu0 %v38
    %94 = vmatpush.msra.mxu0 %v36
    %95 = vmatmul.f32.gmra.mxu0 %v51
    %v96 = vpop.f32.mrf.mxu0
    %v97 = vadd.f32 %v46, %v96
    %98 = vmatmul.f32.gmra.mxu0 %v54
    %v99 = vpop.f32.mrf.mxu0
    %v100 = vadd.f32 %v46, %v99
    %101 = vdwg.mxu0
    %v102 = vld [vmem:[%s2] sm:$0xff]
    %v103 = vld [vmem:[%s2 + $0x8] sm:$0xff]
    %v104 = vld [vmem:[%s2 + $0x10] sm:$0xff]
    %v105 = vld [vmem:[%s2 + $0x18] sm:$0xff]
    %v106 = vld [vmem:[%s2 + $0x20] sm:$0xff]
    %v107 = vld [vmem:[%s2 + $0x28] sm:$0xff]
    %v108 = vld [vmem:[%s2 + $0x30] sm:$0xff]
    %v109 = vld [vmem:[%s2 + $0x38] sm:$0xff]
    %v110 = vld [vmem:[%s2 + $0x40] sm:$0xff]
    %v111 = vld [vmem:[%s2 + $0x48] sm:$0xff]
    %v112 = vld [vmem:[%s2 + $0x50] sm:$0xff]
    %v113 = vld [vmem:[%s2 + $0x58] sm:$0xff]
    %v114 = vld [vmem:[%s2 + $0x60] sm:$0xff]
    %v115 = vld [vmem:[%s2 + $0x68] sm:$0xff]
    %v116 = vld [vmem:[%s2 + $0x70] sm:$0xff]
    %v117 = vld [vmem:[%s2 + $0x78] sm:$0xff]
    %v118 = vld [vmem:[%s4] sm:$0xff]
    %v119 = vld [vmem:[%s4 + $0x8] sm:$0xff]
    %v120 = vld [vmem:[%s4 + $0x10] sm:$0xff]
    %v121 = vld [vmem:[%s4 + $0x18] sm:$0xff]
    %v122 = vld [vmem:[%s4 + $0x20] sm:$0xff]
    %v123 = vld [vmem:[%s4 + $0x28] sm:$0xff]
    %v124 = vld [vmem:[%s4 + $0x30] sm:$0xff]
    %v125 = vld [vmem:[%s4 + $0x38] sm:$0xff]
    %v126 = vld [vmem:[%s4 + $0x40] sm:$0xff]
    %v127 = vld [vmem:[%s4 + $0x48] sm:$0xff]
    %v128 = vld [vmem:[%s4 + $0x50] sm:$0xff]
    %v129 = vld [vmem:[%s4 + $0x58] sm:$0xff]
    %v130 = vld [vmem:[%s4 + $0x60] sm:$0xff]
    %v131 = vld [vmem:[%s4 + $0x68] sm:$0xff]
    %v132 = vld [vmem:[%s4 + $0x70] sm:$0xff]
    %v133 = vld [vmem:[%s4 + $0x78] sm:$0xff]
    %v134 = vld [vmem:[%s4 + $0x80] sm:$0xff]
    %v135 = vld [vmem:[%s4 + $0x88] sm:$0xff]
    %v136 = vld [vmem:[%s4 + $0x90] sm:$0xff]
    %v137 = vld [vmem:[%s4 + $0x98] sm:$0xff]
    %v138 = vld [vmem:[%s4 + $0xa0] sm:$0xff]
    %v139 = vld [vmem:[%s4 + $0xa8] sm:$0xff]
    %v140 = vld [vmem:[%s4 + $0xb0] sm:$0xff]
    %v141 = vld [vmem:[%s4 + $0xb8] sm:$0xff]
    %v142 = vld [vmem:[%s4 + $0xc0] sm:$0xff]
    %v143 = vld [vmem:[%s4 + $0xc8] sm:$0xff]
    %v144 = vld [vmem:[%s4 + $0xd0] sm:$0xff]
    %v145 = vld [vmem:[%s4 + $0xd8] sm:$0xff]
    %v146 = vld [vmem:[%s4 + $0xe0] sm:$0xff]
    %v147 = vld [vmem:[%s4 + $0xe8] sm:$0xff]
    %v148 = vld [vmem:[%s4 + $0xf0] sm:$0xff]
    %v149 = vld [vmem:[%s4 + $0xf8] sm:$0xff]
    %v150 = vld [vmem:[%s5] sm:$0x3]
    %vm151 = vcmask 523264
    %v153 = vsel %vm151, 0.0, 0
    %155 = vmatpush.msra.mxu0 0.0
    %156 = vmatpush.msra.mxu0 0.0
    %157 = vmatpush.msra.mxu0 0.0
    %158 = vmatpush.msra.mxu0 0.0
    %159 = vmatpush.msra.mxu0 0.0
    %160 = vmatpush.msra.mxu0 0.0
    %161 = vmatpush.msra.mxu0 0.0
    %162 = vmatpush.msra.mxu0 0.0
    %163 = vmatpush.msra.mxu0 %v116
    %164 = vmatpush.msra.mxu0 %v114
    %165 = vmatpush.msra.mxu0 %v112
    %166 = vmatpush.msra.mxu0 %v110
    %167 = vmatpush.msra.mxu0 %v108
    %168 = vmatpush.msra.mxu0 %v106
    %169 = vmatpush.msra.mxu0 %v104
    %170 = vmatpush.msra.mxu0 %v102
    %171 = vmatmul.f32.gmra.mxu0 %v153
    %v172 = vpop.f32.mrf.mxu0
    %v173 = vadd.f32 0.0, %v172
    %174 = vdwg.mxu0
    %175 = vmatpush.msra.mxu0 0.0
    %176 = vmatpush.msra.mxu0 0.0
    %177 = vmatpush.msra.mxu0 0.0
    %178 = vmatpush.msra.mxu0 0.0
    %179 = vmatpush.msra.mxu0 0.0
    %180 = vmatpush.msra.mxu0 0.0
    %181 = vmatpush.msra.mxu0 0.0
    %182 = vmatpush.msra.mxu0 0.0
    %183 = vmatpush.msra.mxu0 %v117
    %184 = vmatpush.msra.mxu0 %v115
    %185 = vmatpush.msra.mxu0 %v113
    %186 = vmatpush.msra.mxu0 %v111
    %187 = vmatpush.msra.mxu0 %v109
    %188 = vmatpush.msra.mxu0 %v107
    %189 = vmatpush.msra.mxu0 %v105
    %190 = vmatpush.msra.mxu0 %v103
    %191 = vmatmul.f32.gmra.mxu0 %v153
    %v192 = vpop.f32.mrf.mxu0
    %v193 = vadd.f32 0.0, %v192
    %194 = vdwg.mxu0
    %v195 = vadd.f32 %v74, %v173
    %v196 = vadd.f32 %v97, %v193
    %v197 = vxor.u32 %v195, 2147483648
    %v198 = vxor.u32 %v196, 2147483648
    %v199 = vmul.f32 %v197, 1.442695
    %v200 = vpow.pop %v199
    %v201 = vmul.f32 %v198, 1.442695
    %v202 = vpow.pop %v201
    %v203 = vadd.f32 %v200, 1.0
    %v204 = vadd.f32 %v202, 1.0
    %v205 = vrcp.pop %v203
    %v206 = vmul.f32 %v203, %v205
    %v207 = vsub.f32 1.0, %v206
    %v208 = vmul.f32 %v205, %v207
    %v209 = vadd.f32 %v205, %v208
    %vm210 = vweird.f32 %v203
    %vm211 = vweird.f32 %v205
    %vm212 = vmor %vm210, %vm211
    %v213 = vsel %vm212, %v205, %v209
    %v214 = vand.u32 2147483647, %v203
    %vm215 = vcmp.eq.f32.partialorder %v214, 8.507059e+37
    %v216 = vand.u32 %v203, 2147483648
    %v217 = vor.u32 1.1754944e-38, %v216
    %v218 = vsel %vm215, %v217, %v213
    %v219 = vmul.f32 1.0, %v218
    %v220 = vrcp.pop %v204
    %v221 = vmul.f32 %v204, %v220
    %v222 = vsub.f32 1.0, %v221
    %v223 = vmul.f32 %v220, %v222
    %v224 = vadd.f32 %v220, %v223
    %vm225 = vweird.f32 %v204
    %vm226 = vweird.f32 %v220
    %vm227 = vmor %vm225, %vm226
    %v228 = vsel %vm227, %v220, %v224
    %v229 = vand.u32 2147483647, %v204
    %vm230 = vcmp.eq.f32.partialorder %v229, 8.507059e+37
    %v231 = vand.u32 %v204, 2147483648
    %v232 = vor.u32 1.1754944e-38, %v231
    %v233 = vsel %vm230, %v232, %v228
    %v234 = vmul.f32 1.0, %v233
    %v235 = vtanh.pop %v196
    %v236 = vmul.f32 %v219, 0.0
    %v237 = vmul.f32 %v219, %v235
    %239 = vrot.lane.b32.xlu0 %v237, 64
    %v240 = vpop.permute.xlu0 %239
    %v242 = vadd.f32 %v236, %v240
    %v243 = vtanh.pop %v242
    %v244 = vmul.f32 %v234, %v243
    %246 = vrot.lane.b32.xlu0 %v244, 64
    %v247 = vpop.permute.xlu0 %246
    %v249 = vsel %vm151, %v247, 0.0
    %v251 = vperm.slane %v150, 0
    %v252 = vperm.slane %v150, 1
    %255 = vmatpush.msra.mxu0 %v148
    %256 = vmatpush.msra.mxu0 %v146
    %257 = vmatpush.msra.mxu0 %v144
    %258 = vmatpush.msra.mxu0 %v142
    %259 = vmatpush.msra.mxu0 %v140
    %260 = vmatpush.msra.mxu0 %v138
    %261 = vmatpush.msra.mxu0 %v136
    %262 = vmatpush.msra.mxu0 %v134
    %263 = vmatpush.msra.mxu0 %v132
    %264 = vmatpush.msra.mxu0 %v130
    %265 = vmatpush.msra.mxu0 %v128
    %266 = vmatpush.msra.mxu0 %v126
    %267 = vmatpush.msra.mxu0 %v124
    %268 = vmatpush.msra.mxu0 %v122
    %269 = vmatpush.msra.mxu0 %v120
    %270 = vmatpush.msra.mxu0 %v118
    %271 = vmatmul.f32.gmra.mxu0 %v249
    %v272 = vpop.f32.mrf.mxu0
    %v273 = vadd.f32 %v251, %v272
    %274 = vdwg.mxu0
    %275 = vmatpush.msra.mxu0 %v149
    %276 = vmatpush.msra.mxu0 %v147
    %277 = vmatpush.msra.mxu0 %v145
    %278 = vmatpush.msra.mxu0 %v143
    %279 = vmatpush.msra.mxu0 %v141
    %280 = vmatpush.msra.mxu0 %v139
    %281 = vmatpush.msra.mxu0 %v137
    %282 = vmatpush.msra.mxu0 %v135
    %283 = vmatpush.msra.mxu0 %v133
    %284 = vmatpush.msra.mxu0 %v131
    %285 = vmatpush.msra.mxu0 %v129
    %286 = vmatpush.msra.mxu0 %v127
    %287 = vmatpush.msra.mxu0 %v125
    %288 = vmatpush.msra.mxu0 %v123
    %289 = vmatpush.msra.mxu0 %v121
    %290 = vmatpush.msra.mxu0 %v119
    %291 = vmatmul.f32.gmra.mxu0 %v249
    %v292 = vpop.f32.mrf.mxu0
    %v293 = vadd.f32 %v252, %v292
    %294 = vdwg.mxu0
    %v295 = vxor.u32 %v273, 2147483648
    %v296 = vxor.u32 %v293, 2147483648
    %v297 = vmul.f32 %v295, 1.442695
    %v298 = vpow.pop %v297
    %v299 = vmul.f32 %v296, 1.442695
    %v300 = vpow.pop %v299
    %v301 = vadd.f32 %v298, 1.0
    %v302 = vadd.f32 %v300, 1.0
    %v303 = vrcp.pop %v301
    %v304 = vmul.f32 %v301, %v303
    %v305 = vsub.f32 1.0, %v304
    %v306 = vmul.f32 %v303, %v305
    %v307 = vadd.f32 %v303, %v306
    %vm308 = vweird.f32 %v301
    %vm309 = vweird.f32 %v303
    %vm310 = vmor %vm308, %vm309
    %v311 = vsel %vm310, %v303, %v307
    %v312 = vand.u32 2147483647, %v301
    %vm313 = vcmp.eq.f32.partialorder %v312, 8.507059e+37
    %v314 = vand.u32 %v301, 2147483648
    %v315 = vor.u32 1.1754944e-38, %v314
    %v316 = vsel %vm313, %v315, %v311
    %v317 = vmul.f32 1.0, %v316
    %v318 = vrcp.pop %v302
    %v319 = vmul.f32 %v302, %v318
    %v320 = vsub.f32 1.0, %v319
    %v321 = vmul.f32 %v318, %v320
    %v322 = vadd.f32 %v318, %v321
    %vm323 = vweird.f32 %v302
    %vm324 = vweird.f32 %v318
    %vm325 = vmor %vm323, %vm324
    %v326 = vsel %vm325, %v318, %v322
    %v327 = vand.u32 2147483647, %v302
    %vm328 = vcmp.eq.f32.partialorder %v327, 8.507059e+37
    %v329 = vand.u32 %v302, 2147483648
    %v330 = vor.u32 1.1754944e-38, %v329
    %v331 = vsel %vm328, %v330, %v326
    %v332 = vmul.f32 1.0, %v331
    %v333 = vtanh.pop %v293
    %v334 = vmul.f32 %v317, 0.0
    %v335 = vmul.f32 %v317, %v333
    %337 = vrot.lane.b32.xlu0 %v335, 64
    %v338 = vpop.permute.xlu0 %337
    %v340 = vadd.f32 %v334, %v338
    %v341 = vtanh.pop %v340
    %v342 = vmul.f32 %v332, %v341
    %v343 = vsel %vm151, %v247, 0
    %345 = vmatpush.msra.mxu0 0.0
    %346 = vmatpush.msra.mxu0 0.0
    %347 = vmatpush.msra.mxu0 0.0
    %348 = vmatpush.msra.mxu0 0.0
    %349 = vmatpush.msra.mxu0 0.0
    %350 = vmatpush.msra.mxu0 0.0
    %351 = vmatpush.msra.mxu0 0.0
    %352 = vmatpush.msra.mxu0 0.0
    %353 = vmatpush.msra.mxu0 %v116
    %354 = vmatpush.msra.mxu0 %v114
    %355 = vmatpush.msra.mxu0 %v112
    %356 = vmatpush.msra.mxu0 %v110
    %357 = vmatpush.msra.mxu0 %v108
    %358 = vmatpush.msra.mxu0 %v106
    %359 = vmatpush.msra.mxu0 %v104
    %360 = vmatpush.msra.mxu0 %v102
    %361 = vmatmul.f32.gmra.mxu0 %v343
    %v362 = vpop.f32.mrf.mxu0
    %v363 = vadd.f32 0.0, %v362
    %364 = vdwg.mxu0
    %365 = vmatpush.msra.mxu0 0.0
    %366 = vmatpush.msra.mxu0 0.0
    %367 = vmatpush.msra.mxu0 0.0
    %368 = vmatpush.msra.mxu0 0.0
    %369 = vmatpush.msra.mxu0 0.0
    %370 = vmatpush.msra.mxu0 0.0
    %371 = vmatpush.msra.mxu0 0.0
    %372 = vmatpush.msra.mxu0 0.0
    %373 = vmatpush.msra.mxu0 %v117
    %374 = vmatpush.msra.mxu0 %v115
    %375 = vmatpush.msra.mxu0 %v113
    %376 = vmatpush.msra.mxu0 %v111
    %377 = vmatpush.msra.mxu0 %v109
    %378 = vmatpush.msra.mxu0 %v107
    %379 = vmatpush.msra.mxu0 %v105
    %380 = vmatpush.msra.mxu0 %v103
    %381 = vmatmul.f32.gmra.mxu0 %v343
    %v382 = vpop.f32.mrf.mxu0
    %v383 = vadd.f32 0.0, %v382
    %384 = vdwg.mxu0
    %v387 = vrot.slane %v363, 6
    %v388 = vrot.slane %v383, 6
    %v391 = vadd.f32 %v74, %v387
    %v392 = vadd.f32 %v97, %v388
    %v393 = vxor.u32 %v391, 2147483648
    %v394 = vxor.u32 %v392, 2147483648
    %v395 = vmul.f32 %v393, 1.442695
    %v396 = vpow.pop %v395
    %v397 = vmul.f32 %v394, 1.442695
    %v398 = vpow.pop %v397
    %v399 = vadd.f32 %v396, 1.0
    %v400 = vadd.f32 %v398, 1.0
    %v401 = vrcp.pop %v399
    %v402 = vmul.f32 %v399, %v401
    %v403 = vsub.f32 1.0, %v402
    %v404 = vmul.f32 %v401, %v403
    %v405 = vadd.f32 %v401, %v404
    %vm406 = vweird.f32 %v399
    %vm407 = vweird.f32 %v401
    %vm408 = vmor %vm406, %vm407
    %v409 = vsel %vm408, %v401, %v405
    %v410 = vand.u32 2147483647, %v399
    %vm411 = vcmp.eq.f32.partialorder %v410, 8.507059e+37
    %v412 = vand.u32 %v399, 2147483648
    %v413 = vor.u32 1.1754944e-38, %v412
    %v414 = vsel %vm411, %v413, %v409
    %v415 = vmul.f32 1.0, %v414
    %v416 = vrcp.pop %v400
    %v417 = vmul.f32 %v400, %v416
    %v418 = vsub.f32 1.0, %v417
    %v419 = vmul.f32 %v416, %v418
    %v420 = vadd.f32 %v416, %v419
    %vm421 = vweird.f32 %v400
    %vm422 = vweird.f32 %v416
    %vm423 = vmor %vm421, %vm422
    %v424 = vsel %vm423, %v416, %v420
    %v425 = vand.u32 2147483647, %v400
    %vm426 = vcmp.eq.f32.partialorder %v425, 8.507059e+37
    %v427 = vand.u32 %v400, 2147483648
    %v428 = vor.u32 1.1754944e-38, %v427
    %v429 = vsel %vm426, %v428, %v424
    %v430 = vmul.f32 1.0, %v429
    %v431 = vtanh.pop %v392
    %v433 = vrot.slane %v242, 6
    %v435 = vmul.f32 %v415, %v433
    %v436 = vmul.f32 %v415, %v431
    %438 = vrot.lane.b32.xlu0 %v436, 64
    %v439 = vpop.permute.xlu0 %438
    %v441 = vadd.f32 %v435, %v439
    %v442 = vtanh.pop %v441
    %v443 = vmul.f32 %v430, %v442
    %445 = vrot.lane.b32.xlu0 %v443, 64
    %v446 = vpop.permute.xlu0 %445
    %v449 = vrot.slane %v342, 6
    %v451 = vsel %vm151, %v446, %v449
    %v453 = vrot.slane %v451, 2
    %455 = vmatpush.msra.mxu0 %v148
    %456 = vmatpush.msra.mxu0 %v146
    %457 = vmatpush.msra.mxu0 %v144
    %458 = vmatpush.msra.mxu0 %v142
    %459 = vmatpush.msra.mxu0 %v140
    %460 = vmatpush.msra.mxu0 %v138
    %461 = vmatpush.msra.mxu0 %v136
    %462 = vmatpush.msra.mxu0 %v134
    %463 = vmatpush.msra.mxu0 %v132
    %464 = vmatpush.msra.mxu0 %v130
    %465 = vmatpush.msra.mxu0 %v128
    %466 = vmatpush.msra.mxu0 %v126
    %467 = vmatpush.msra.mxu0 %v124
    %468 = vmatpush.msra.mxu0 %v122
    %469 = vmatpush.msra.mxu0 %v120
    %470 = vmatpush.msra.mxu0 %v118
    %471 = vmatmul.f32.gmra.mxu0 %v453
    %v472 = vpop.f32.mrf.mxu0
    %v473 = vadd.f32 %v251, %v472
    %474 = vdwg.mxu0
    %475 = vmatpush.msra.mxu0 %v149
    %476 = vmatpush.msra.mxu0 %v147
    %477 = vmatpush.msra.mxu0 %v145
    %478 = vmatpush.msra.mxu0 %v143
    %479 = vmatpush.msra.mxu0 %v141
    %480 = vmatpush.msra.mxu0 %v139
    %481 = vmatpush.msra.mxu0 %v137
    %482 = vmatpush.msra.mxu0 %v135
    %483 = vmatpush.msra.mxu0 %v133
    %484 = vmatpush.msra.mxu0 %v131
    %485 = vmatpush.msra.mxu0 %v129
    %486 = vmatpush.msra.mxu0 %v127
    %487 = vmatpush.msra.mxu0 %v125
    %488 = vmatpush.msra.mxu0 %v123
    %489 = vmatpush.msra.mxu0 %v121
    %490 = vmatpush.msra.mxu0 %v119
    %491 = vmatmul.f32.gmra.mxu0 %v453
    %v492 = vpop.f32.mrf.mxu0
    %v493 = vadd.f32 %v252, %v492
    %494 = vdwg.mxu0
    %v495 = vxor.u32 %v473, 2147483648
    %v496 = vxor.u32 %v493, 2147483648
    %v497 = vmul.f32 %v495, 1.442695
    %v498 = vpow.pop %v497
    %v499 = vmul.f32 %v496, 1.442695
    %v500 = vpow.pop %v499
    %v501 = vadd.f32 %v498, 1.0
    %v502 = vadd.f32 %v500, 1.0
    %v503 = vrcp.pop %v501
    %v504 = vmul.f32 %v501, %v503
    %v505 = vsub.f32 1.0, %v504
    %v506 = vmul.f32 %v503, %v505
    %v507 = vadd.f32 %v503, %v506
    %vm508 = vweird.f32 %v501
    %vm509 = vweird.f32 %v503
    %vm510 = vmor %vm508, %vm509
    %v511 = vsel %vm510, %v503, %v507
    %v512 = vand.u32 2147483647, %v501
    %vm513 = vcmp.eq.f32.partialorder %v512, 8.507059e+37
    %v514 = vand.u32 %v501, 2147483648
    %v515 = vor.u32 1.1754944e-38, %v514
    %v516 = vsel %vm513, %v515, %v511
    %v517 = vmul.f32 1.0, %v516
    %v518 = vrcp.pop %v502
    %v519 = vmul.f32 %v502, %v518
    %v520 = vsub.f32 1.0, %v519
    %v521 = vmul.f32 %v518, %v520
    %v522 = vadd.f32 %v518, %v521
    %vm523 = vweird.f32 %v502
    %vm524 = vweird.f32 %v518
    %vm525 = vmor %vm523, %vm524
    %v526 = vsel %vm525, %v518, %v522
    %v527 = vand.u32 2147483647, %v502
    %vm528 = vcmp.eq.f32.partialorder %v527, 8.507059e+37
    %v529 = vand.u32 %v502, 2147483648
    %v530 = vor.u32 1.1754944e-38, %v529
    %v531 = vsel %vm528, %v530, %v526
    %v532 = vmul.f32 1.0, %v531
    %v533 = vtanh.pop %v493
    %v534 = vmul.f32 %v517, %v340
    %v535 = vmul.f32 %v517, %v533
    %537 = vrot.lane.b32.xlu0 %v535, 64
    %v538 = vpop.permute.xlu0 %537
    %v540 = vadd.f32 %v534, %v538
    %v541 = vtanh.pop %v540
    %v542 = vmul.f32 %v532, %v541
    %v543 = vrot.slane %v443, 2
    %544 = vrot.lane.b32.xlu0 %v543, 64
    %v545 = vpop.permute.xlu0 %544
    %v546 = vsel %vm151, %v545, 0
    %548 = vmatpush.msra.mxu0 0.0
    %549 = vmatpush.msra.mxu0 0.0
    %550 = vmatpush.msra.mxu0 0.0
    %551 = vmatpush.msra.mxu0 0.0
    %552 = vmatpush.msra.mxu0 0.0
    %553 = vmatpush.msra.mxu0 0.0
    %554 = vmatpush.msra.mxu0 0.0
    %555 = vmatpush.msra.mxu0 0.0
    %556 = vmatpush.msra.mxu0 %v116
    %557 = vmatpush.msra.mxu0 %v114
    %558 = vmatpush.msra.mxu0 %v112
    %559 = vmatpush.msra.mxu0 %v110
    %560 = vmatpush.msra.mxu0 %v108
    %561 = vmatpush.msra.mxu0 %v106
    %562 = vmatpush.msra.mxu0 %v104
    %563 = vmatpush.msra.mxu0 %v102
    %564 = vmatmul.f32.gmra.mxu0 %v546
    %v565 = vpop.f32.mrf.mxu0
    %v566 = vadd.f32 0.0, %v565
    %567 = vdwg.mxu0
    %568 = vmatpush.msra.mxu0 0.0
    %569 = vmatpush.msra.mxu0 0.0
    %570 = vmatpush.msra.mxu0 0.0
    %571 = vmatpush.msra.mxu0 0.0
    %572 = vmatpush.msra.mxu0 0.0
    %573 = vmatpush.msra.mxu0 0.0
    %574 = vmatpush.msra.mxu0 0.0
    %575 = vmatpush.msra.mxu0 0.0
    %576 = vmatpush.msra.mxu0 %v117
    %577 = vmatpush.msra.mxu0 %v115
    %578 = vmatpush.msra.mxu0 %v113
    %579 = vmatpush.msra.mxu0 %v111
    %580 = vmatpush.msra.mxu0 %v109
    %581 = vmatpush.msra.mxu0 %v107
    %582 = vmatpush.msra.mxu0 %v105
    %583 = vmatpush.msra.mxu0 %v103
    %584 = vmatmul.f32.gmra.mxu0 %v546
    %v585 = vpop.f32.mrf.mxu0
    %v586 = vadd.f32 0.0, %v585
    %587 = vdwg.mxu0
    %v590 = vrot.slane %v566, 4
    %v591 = vrot.slane %v586, 4
    %v594 = vadd.f32 %v74, %v590
    %v595 = vadd.f32 %v97, %v591
    %v596 = vxor.u32 %v594, 2147483648
    %v597 = vxor.u32 %v595, 2147483648
    %v598 = vmul.f32 %v596, 1.442695
    %v599 = vpow.pop %v598
    %v600 = vmul.f32 %v597, 1.442695
    %v601 = vpow.pop %v600
    %v602 = vadd.f32 %v599, 1.0
    %v603 = vadd.f32 %v601, 1.0
    %v604 = vrcp.pop %v602
    %v605 = vmul.f32 %v602, %v604
    %v606 = vsub.f32 1.0, %v605
    %v607 = vmul.f32 %v604, %v606
    %v608 = vadd.f32 %v604, %v607
    %vm609 = vweird.f32 %v602
    %vm610 = vweird.f32 %v604
    %vm611 = vmor %vm609, %vm610
    %v612 = vsel %vm611, %v604, %v608
    %v613 = vand.u32 2147483647, %v602
    %vm614 = vcmp.eq.f32.partialorder %v613, 8.507059e+37
    %v615 = vand.u32 %v602, 2147483648
    %v616 = vor.u32 1.1754944e-38, %v615
    %v617 = vsel %vm614, %v616, %v612
    %v618 = vmul.f32 1.0, %v617
    %v619 = vrcp.pop %v603
    %v620 = vmul.f32 %v603, %v619
    %v621 = vsub.f32 1.0, %v620
    %v622 = vmul.f32 %v619, %v621
    %v623 = vadd.f32 %v619, %v622
    %vm624 = vweird.f32 %v603
    %vm625 = vweird.f32 %v619
    %vm626 = vmor %vm624, %vm625
    %v627 = vsel %vm626, %v619, %v623
    %v628 = vand.u32 2147483647, %v603
    %vm629 = vcmp.eq.f32.partialorder %v628, 8.507059e+37
    %v630 = vand.u32 %v603, 2147483648
    %v631 = vor.u32 1.1754944e-38, %v630
    %v632 = vsel %vm629, %v631, %v627
    %v633 = vmul.f32 1.0, %v632
    %v634 = vtanh.pop %v595
    %v636 = vrot.slane %v441, 6
    %v638 = vmul.f32 %v618, %v636
    %v639 = vmul.f32 %v618, %v634
    %641 = vrot.lane.b32.xlu0 %v639, 64
    %v642 = vpop.permute.xlu0 %641
    %v644 = vadd.f32 %v638, %v642
    %v645 = vtanh.pop %v644
    %v646 = vmul.f32 %v633, %v645
    %648 = vrot.lane.b32.xlu0 %v646, 64
    %v649 = vpop.permute.xlu0 %648
    %v652 = vrot.slane %v542, 4
    %v654 = vsel %vm151, %v649, %v652
    %v656 = vrot.slane %v654, 4
    %658 = vmatpush.msra.mxu0 %v148
    %659 = vmatpush.msra.mxu0 %v146
    %660 = vmatpush.msra.mxu0 %v144
    %661 = vmatpush.msra.mxu0 %v142
    %662 = vmatpush.msra.mxu0 %v140
    %663 = vmatpush.msra.mxu0 %v138
    %664 = vmatpush.msra.mxu0 %v136
    %665 = vmatpush.msra.mxu0 %v134
    %666 = vmatpush.msra.mxu0 %v132
    %667 = vmatpush.msra.mxu0 %v130
    %668 = vmatpush.msra.mxu0 %v128
    %669 = vmatpush.msra.mxu0 %v126
    %670 = vmatpush.msra.mxu0 %v124
    %671 = vmatpush.msra.mxu0 %v122
    %672 = vmatpush.msra.mxu0 %v120
    %673 = vmatpush.msra.mxu0 %v118
    %674 = vmatmul.f32.gmra.mxu0 %v656
    %v675 = vpop.f32.mrf.mxu0
    %v676 = vadd.f32 %v251, %v675
    %677 = vdwg.mxu0
    %678 = vmatpush.msra.mxu0 %v149
    %679 = vmatpush.msra.mxu0 %v147
    %680 = vmatpush.msra.mxu0 %v145
    %681 = vmatpush.msra.mxu0 %v143
    %682 = vmatpush.msra.mxu0 %v141
    %683 = vmatpush.msra.mxu0 %v139
    %684 = vmatpush.msra.mxu0 %v137
    %685 = vmatpush.msra.mxu0 %v135
    %686 = vmatpush.msra.mxu0 %v133
    %687 = vmatpush.msra.mxu0 %v131
    %688 = vmatpush.msra.mxu0 %v129
    %689 = vmatpush.msra.mxu0 %v127
    %690 = vmatpush.msra.mxu0 %v125
    %691 = vmatpush.msra.mxu0 %v123
    %692 = vmatpush.msra.mxu0 %v121
    %693 = vmatpush.msra.mxu0 %v119
    %694 = vmatmul.f32.gmra.mxu0 %v656
    %v695 = vpop.f32.mrf.mxu0
    %v696 = vadd.f32 %v252, %v695
    %697 = vdwg.mxu0
    %v698 = vxor.u32 %v676, 2147483648
    %v699 = vxor.u32 %v696, 2147483648
    %v700 = vmul.f32 %v698, 1.442695
    %v701 = vpow.pop %v700
    %v702 = vmul.f32 %v699, 1.442695
    %v703 = vpow.pop %v702
    %v704 = vadd.f32 %v701, 1.0
    %v705 = vadd.f32 %v703, 1.0
    %v706 = vrcp.pop %v704
    %v707 = vmul.f32 %v704, %v706
    %v708 = vsub.f32 1.0, %v707
    %v709 = vmul.f32 %v706, %v708
    %v710 = vadd.f32 %v706, %v709
    %vm711 = vweird.f32 %v704
    %vm712 = vweird.f32 %v706
    %vm713 = vmor %vm711, %vm712
    %v714 = vsel %vm713, %v706, %v710
    %v715 = vand.u32 2147483647, %v704
    %vm716 = vcmp.eq.f32.partialorder %v715, 8.507059e+37
    %v717 = vand.u32 %v704, 2147483648
    %v718 = vor.u32 1.1754944e-38, %v717
    %v719 = vsel %vm716, %v718, %v714
    %v720 = vmul.f32 1.0, %v719
    %v721 = vrcp.pop %v705
    %v722 = vmul.f32 %v705, %v721
    %v723 = vsub.f32 1.0, %v722
    %v724 = vmul.f32 %v721, %v723
    %v725 = vadd.f32 %v721, %v724
    %vm726 = vweird.f32 %v705
    %vm727 = vweird.f32 %v721
    %vm728 = vmor %vm726, %vm727
    %v729 = vsel %vm728, %v721, %v725
    %v730 = vand.u32 2147483647, %v705
    %vm731 = vcmp.eq.f32.partialorder %v730, 8.507059e+37
    %v732 = vand.u32 %v705, 2147483648
    %v733 = vor.u32 1.1754944e-38, %v732
    %v734 = vsel %vm731, %v733, %v729
    %v735 = vmul.f32 1.0, %v734
    %v736 = vtanh.pop %v696
    %v737 = vmul.f32 %v720, %v540
    %v738 = vmul.f32 %v720, %v736
    %740 = vrot.lane.b32.xlu0 %v738, 64
    %v741 = vpop.permute.xlu0 %740
    %v743 = vadd.f32 %v737, %v741
    %v744 = vtanh.pop %v743
    %v745 = vmul.f32 %v735, %v744
    %v746 = vrot.slane %v646, 4
    %747 = vrot.lane.b32.xlu0 %v746, 64
    %v748 = vpop.permute.xlu0 %747
    %v749 = vsel %vm151, %v748, 0
    %751 = vmatpush.msra.mxu0 0.0
    %752 = vmatpush.msra.mxu0 0.0
    %753 = vmatpush.msra.mxu0 0.0
    %754 = vmatpush.msra.mxu0 0.0
    %755 = vmatpush.msra.mxu0 0.0
    %756 = vmatpush.msra.mxu0 0.0
    %757 = vmatpush.msra.mxu0 0.0
    %758 = vmatpush.msra.mxu0 0.0
    %759 = vmatpush.msra.mxu0 %v116
    %760 = vmatpush.msra.mxu0 %v114
    %761 = vmatpush.msra.mxu0 %v112
    %762 = vmatpush.msra.mxu0 %v110
    %763 = vmatpush.msra.mxu0 %v108
    %764 = vmatpush.msra.mxu0 %v106
    %765 = vmatpush.msra.mxu0 %v104
    %766 = vmatpush.msra.mxu0 %v102
    %767 = vmatmul.f32.gmra.mxu0 %v749
    %v768 = vpop.f32.mrf.mxu0
    %v769 = vadd.f32 0.0, %v768
    %770 = vdwg.mxu0
    %771 = vmatpush.msra.mxu0 0.0
    %772 = vmatpush.msra.mxu0 0.0
    %773 = vmatpush.msra.mxu0 0.0
    %774 = vmatpush.msra.mxu0 0.0
    %775 = vmatpush.msra.mxu0 0.0
    %776 = vmatpush.msra.mxu0 0.0
    %777 = vmatpush.msra.mxu0 0.0
    %778 = vmatpush.msra.mxu0 0.0
    %779 = vmatpush.msra.mxu0 %v117
    %780 = vmatpush.msra.mxu0 %v115
    %781 = vmatpush.msra.mxu0 %v113
    %782 = vmatpush.msra.mxu0 %v111
    %783 = vmatpush.msra.mxu0 %v109
    %784 = vmatpush.msra.mxu0 %v107
    %785 = vmatpush.msra.mxu0 %v105
    %786 = vmatpush.msra.mxu0 %v103
    %787 = vmatmul.f32.gmra.mxu0 %v749
    %v788 = vpop.f32.mrf.mxu0
    %v789 = vadd.f32 0.0, %v788
    %790 = vdwg.mxu0
    %v793 = vrot.slane %v769, 2
    %v794 = vrot.slane %v789, 2
    %v797 = vadd.f32 %v74, %v793
    %v798 = vadd.f32 %v97, %v794
    %v799 = vxor.u32 %v797, 2147483648
    %v800 = vxor.u32 %v798, 2147483648
    %v801 = vmul.f32 %v799, 1.442695
    %v802 = vpow.pop %v801
    %v803 = vmul.f32 %v800, 1.442695
    %v804 = vpow.pop %v803
    %v805 = vadd.f32 %v802, 1.0
    %v806 = vadd.f32 %v804, 1.0
    %v807 = vrcp.pop %v805
    %v808 = vmul.f32 %v805, %v807
    %v809 = vsub.f32 1.0, %v808
    %v810 = vmul.f32 %v807, %v809
    %v811 = vadd.f32 %v807, %v810
    %vm812 = vweird.f32 %v805
    %vm813 = vweird.f32 %v807
    %vm814 = vmor %vm812, %vm813
    %v815 = vsel %vm814, %v807, %v811
    %v816 = vand.u32 2147483647, %v805
    %vm817 = vcmp.eq.f32.partialorder %v816, 8.507059e+37
    %v818 = vand.u32 %v805, 2147483648
    %v819 = vor.u32 1.1754944e-38, %v818
    %v820 = vsel %vm817, %v819, %v815
    %v821 = vmul.f32 1.0, %v820
    %v822 = vrcp.pop %v806
    %v823 = vmul.f32 %v806, %v822
    %v824 = vsub.f32 1.0, %v823
    %v825 = vmul.f32 %v822, %v824
    %v826 = vadd.f32 %v822, %v825
    %vm827 = vweird.f32 %v806
    %vm828 = vweird.f32 %v822
    %vm829 = vmor %vm827, %vm828
    %v830 = vsel %vm829, %v822, %v826
    %v831 = vand.u32 2147483647, %v806
    %vm832 = vcmp.eq.f32.partialorder %v831, 8.507059e+37
    %v833 = vand.u32 %v806, 2147483648
    %v834 = vor.u32 1.1754944e-38, %v833
    %v835 = vsel %vm832, %v834, %v830
    %v836 = vmul.f32 1.0, %v835
    %v837 = vtanh.pop %v798
    %v839 = vrot.slane %v644, 6
    %v841 = vmul.f32 %v821, %v839
    %v842 = vmul.f32 %v821, %v837
    %844 = vrot.lane.b32.xlu0 %v842, 64
    %v845 = vpop.permute.xlu0 %844
    %v847 = vadd.f32 %v841, %v845
    %v848 = vtanh.pop %v847
    %v849 = vmul.f32 %v836, %v848
    %851 = vrot.lane.b32.xlu0 %v849, 64
    %v852 = vpop.permute.xlu0 %851
    %v855 = vrot.slane %v745, 2
    %v857 = vsel %vm151, %v852, %v855
    %v859 = vrot.slane %v857, 6
    %861 = vmatpush.msra.mxu0 %v148
    %862 = vmatpush.msra.mxu0 %v146
    %863 = vmatpush.msra.mxu0 %v144
    %864 = vmatpush.msra.mxu0 %v142
    %865 = vmatpush.msra.mxu0 %v140
    %866 = vmatpush.msra.mxu0 %v138
    %867 = vmatpush.msra.mxu0 %v136
    %868 = vmatpush.msra.mxu0 %v134
    %869 = vmatpush.msra.mxu0 %v132
    %870 = vmatpush.msra.mxu0 %v130
    %871 = vmatpush.msra.mxu0 %v128
    %872 = vmatpush.msra.mxu0 %v126
    %873 = vmatpush.msra.mxu0 %v124
    %874 = vmatpush.msra.mxu0 %v122
    %875 = vmatpush.msra.mxu0 %v120
    %876 = vmatpush.msra.mxu0 %v118
    %877 = vmatmul.f32.gmra.mxu0 %v859
    %v878 = vpop.f32.mrf.mxu0
    %v879 = vadd.f32 %v251, %v878
    %880 = vdwg.mxu0
    %881 = vmatpush.msra.mxu0 %v149
    %882 = vmatpush.msra.mxu0 %v147
    %883 = vmatpush.msra.mxu0 %v145
    %884 = vmatpush.msra.mxu0 %v143
    %885 = vmatpush.msra.mxu0 %v141
    %886 = vmatpush.msra.mxu0 %v139
    %887 = vmatpush.msra.mxu0 %v137
    %888 = vmatpush.msra.mxu0 %v135
    %889 = vmatpush.msra.mxu0 %v133
    %890 = vmatpush.msra.mxu0 %v131
    %891 = vmatpush.msra.mxu0 %v129
    %892 = vmatpush.msra.mxu0 %v127
    %893 = vmatpush.msra.mxu0 %v125
    %894 = vmatpush.msra.mxu0 %v123
    %895 = vmatpush.msra.mxu0 %v121
    %896 = vmatpush.msra.mxu0 %v119
    %897 = vmatmul.f32.gmra.mxu0 %v859
    %v898 = vpop.f32.mrf.mxu0
    %v899 = vadd.f32 %v252, %v898
    %900 = vdwg.mxu0
    %v901 = vxor.u32 %v879, 2147483648
    %v902 = vxor.u32 %v899, 2147483648
    %v903 = vmul.f32 %v901, 1.442695
    %v904 = vpow.pop %v903
    %v905 = vmul.f32 %v902, 1.442695
    %v906 = vpow.pop %v905
    %v907 = vadd.f32 %v904, 1.0
    %v908 = vadd.f32 %v906, 1.0
    %v909 = vrcp.pop %v907
    %v910 = vmul.f32 %v907, %v909
    %v911 = vsub.f32 1.0, %v910
    %v912 = vmul.f32 %v909, %v911
    %v913 = vadd.f32 %v909, %v912
    %vm914 = vweird.f32 %v907
    %vm915 = vweird.f32 %v909
    %vm916 = vmor %vm914, %vm915
    %v917 = vsel %vm916, %v909, %v913
    %v918 = vand.u32 2147483647, %v907
    %vm919 = vcmp.eq.f32.partialorder %v918, 8.507059e+37
    %v920 = vand.u32 %v907, 2147483648
    %v921 = vor.u32 1.1754944e-38, %v920
    %v922 = vsel %vm919, %v921, %v917
    %v923 = vmul.f32 1.0, %v922
    %v924 = vrcp.pop %v908
    %v925 = vmul.f32 %v908, %v924
    %v926 = vsub.f32 1.0, %v925
    %v927 = vmul.f32 %v924, %v926
    %v928 = vadd.f32 %v924, %v927
    %vm929 = vweird.f32 %v908
    %vm930 = vweird.f32 %v924
    %vm931 = vmor %vm929, %vm930
    %v932 = vsel %vm931, %v924, %v928
    %v933 = vand.u32 2147483647, %v908
    %vm934 = vcmp.eq.f32.partialorder %v933, 8.507059e+37
    %v935 = vand.u32 %v908, 2147483648
    %v936 = vor.u32 1.1754944e-38, %v935
    %v937 = vsel %vm934, %v936, %v932
    %v938 = vmul.f32 1.0, %v937
    %v939 = vtanh.pop %v899
    %v940 = vmul.f32 %v923, %v743
    %v941 = vmul.f32 %v923, %v939
    %943 = vrot.lane.b32.xlu0 %v941, 64
    %v944 = vpop.permute.xlu0 %943
    %v946 = vadd.f32 %v940, %v944
    %v947 = vtanh.pop %v946
    %v948 = vmul.f32 %v938, %v947
    %v949 = vrot.slane %v849, 6
    %950 = vrot.lane.b32.xlu0 %v949, 64
    %v951 = vpop.permute.xlu0 %950
    %v952 = vsel %vm151, %v951, 0
    %954 = vmatpush.msra.mxu0 0.0
    %955 = vmatpush.msra.mxu0 0.0
    %956 = vmatpush.msra.mxu0 0.0
    %957 = vmatpush.msra.mxu0 0.0
    %958 = vmatpush.msra.mxu0 0.0
    %959 = vmatpush.msra.mxu0 0.0
    %960 = vmatpush.msra.mxu0 0.0
    %961 = vmatpush.msra.mxu0 0.0
    %962 = vmatpush.msra.mxu0 %v116
    %963 = vmatpush.msra.mxu0 %v114
    %964 = vmatpush.msra.mxu0 %v112
    %965 = vmatpush.msra.mxu0 %v110
    %966 = vmatpush.msra.mxu0 %v108
    %967 = vmatpush.msra.mxu0 %v106
    %968 = vmatpush.msra.mxu0 %v104
    %969 = vmatpush.msra.mxu0 %v102
    %970 = vmatmul.f32.gmra.mxu0 %v952
    %v971 = vpop.f32.mrf.mxu0
    %v972 = vadd.f32 0.0, %v971
    %973 = vdwg.mxu0
    %974 = vmatpush.msra.mxu0 0.0
    %975 = vmatpush.msra.mxu0 0.0
    %976 = vmatpush.msra.mxu0 0.0
    %977 = vmatpush.msra.mxu0 0.0
    %978 = vmatpush.msra.mxu0 0.0
    %979 = vmatpush.msra.mxu0 0.0
    %980 = vmatpush.msra.mxu0 0.0
    %981 = vmatpush.msra.mxu0 0.0
    %982 = vmatpush.msra.mxu0 %v117
    %983 = vmatpush.msra.mxu0 %v115
    %984 = vmatpush.msra.mxu0 %v113
    %985 = vmatpush.msra.mxu0 %v111
    %986 = vmatpush.msra.mxu0 %v109
    %987 = vmatpush.msra.mxu0 %v107
    %988 = vmatpush.msra.mxu0 %v105
    %989 = vmatpush.msra.mxu0 %v103
    %990 = vmatmul.f32.gmra.mxu0 %v952
    %v991 = vpop.f32.mrf.mxu0
    %v992 = vadd.f32 0.0, %v991
    %993 = vdwg.mxu0
    %v994 = vadd.f32 %v77, %v972
    %v995 = vadd.f32 %v100, %v992
    %v996 = vxor.u32 %v994, 2147483648
    %v997 = vxor.u32 %v995, 2147483648
    %v998 = vmul.f32 %v996, 1.442695
    %v999 = vpow.pop %v998
    %v1000 = vmul.f32 %v997, 1.442695
    %v1001 = vpow.pop %v1000
    %v1002 = vadd.f32 %v999, 1.0
    %v1003 = vadd.f32 %v1001, 1.0
    %v1004 = vrcp.pop %v1002
    %v1005 = vmul.f32 %v1002, %v1004
    %v1006 = vsub.f32 1.0, %v1005
    %v1007 = vmul.f32 %v1004, %v1006
    %v1008 = vadd.f32 %v1004, %v1007
    %vm1009 = vweird.f32 %v1002
    %vm1010 = vweird.f32 %v1004
    %vm1011 = vmor %vm1009, %vm1010
    %v1012 = vsel %vm1011, %v1004, %v1008
    %v1013 = vand.u32 2147483647, %v1002
    %vm1014 = vcmp.eq.f32.partialorder %v1013, 8.507059e+37
    %v1015 = vand.u32 %v1002, 2147483648
    %v1016 = vor.u32 1.1754944e-38, %v1015
    %v1017 = vsel %vm1014, %v1016, %v1012
    %v1018 = vmul.f32 1.0, %v1017
    %v1019 = vrcp.pop %v1003
    %v1020 = vmul.f32 %v1003, %v1019
    %v1021 = vsub.f32 1.0, %v1020
    %v1022 = vmul.f32 %v1019, %v1021
    %v1023 = vadd.f32 %v1019, %v1022
    %vm1024 = vweird.f32 %v1003
    %vm1025 = vweird.f32 %v1019
    %vm1026 = vmor %vm1024, %vm1025
    %v1027 = vsel %vm1026, %v1019, %v1023
    %v1028 = vand.u32 2147483647, %v1003
    %vm1029 = vcmp.eq.f32.partialorder %v1028, 8.507059e+37
    %v1030 = vand.u32 %v1003, 2147483648
    %v1031 = vor.u32 1.1754944e-38, %v1030
    %v1032 = vsel %vm1029, %v1031, %v1027
    %v1033 = vmul.f32 1.0, %v1032
    %v1034 = vtanh.pop %v995
    %v1036 = vrot.slane %v847, 6
    %v1038 = vmul.f32 %v1018, %v1036
    %v1039 = vmul.f32 %v1018, %v1034
    %1041 = vrot.lane.b32.xlu0 %v1039, 64
    %v1042 = vpop.permute.xlu0 %1041
    %v1044 = vadd.f32 %v1038, %v1042
    %v1045 = vtanh.pop %v1044
    %v1046 = vmul.f32 %v1033, %v1045
    %1048 = vrot.lane.b32.xlu0 %v1046, 64
    %v1049 = vpop.permute.xlu0 %1048
    %v1051 = vsel %vm151, %v1049, %v948
    %1052 = vmatpush.msra.mxu0 %v148
    %1053 = vmatpush.msra.mxu0 %v146
    %1054 = vmatpush.msra.mxu0 %v144
    %1055 = vmatpush.msra.mxu0 %v142
    %1056 = vmatpush.msra.mxu0 %v140
    %1057 = vmatpush.msra.mxu0 %v138
    %1058 = vmatpush.msra.mxu0 %v136
    %1059 = vmatpush.msra.mxu0 %v134
    %1060 = vmatpush.msra.mxu0 %v132
    %1061 = vmatpush.msra.mxu0 %v130
    %1062 = vmatpush.msra.mxu0 %v128
    %1063 = vmatpush.msra.mxu0 %v126
    %1064 = vmatpush.msra.mxu0 %v124
    %1065 = vmatpush.msra.mxu0 %v122
    %1066 = vmatpush.msra.mxu0 %v120
    %1067 = vmatpush.msra.mxu0 %v118
    %1068 = vmatmul.f32.gmra.mxu0 %v1051
    %v1069 = vpop.f32.mrf.mxu0
    %v1070 = vadd.f32 %v251, %v1069
    %1071 = vdwg.mxu0
    %1072 = vmatpush.msra.mxu0 %v149
    %1073 = vmatpush.msra.mxu0 %v147
    %1074 = vmatpush.msra.mxu0 %v145
    %1075 = vmatpush.msra.mxu0 %v143
    %1076 = vmatpush.msra.mxu0 %v141
    %1077 = vmatpush.msra.mxu0 %v139
    %1078 = vmatpush.msra.mxu0 %v137
    %1079 = vmatpush.msra.mxu0 %v135
    %1080 = vmatpush.msra.mxu0 %v133
    %1081 = vmatpush.msra.mxu0 %v131
    %1082 = vmatpush.msra.mxu0 %v129
    %1083 = vmatpush.msra.mxu0 %v127
    %1084 = vmatpush.msra.mxu0 %v125
    %1085 = vmatpush.msra.mxu0 %v123
    %1086 = vmatpush.msra.mxu0 %v121
    %1087 = vmatpush.msra.mxu0 %v119
    %1088 = vmatmul.f32.gmra.mxu0 %v1051
    %v1089 = vpop.f32.mrf.mxu0
    %v1090 = vadd.f32 %v252, %v1089
    %1091 = vdwg.mxu0
    %v1092 = vxor.u32 %v1070, 2147483648
    %v1093 = vxor.u32 %v1090, 2147483648
    %v1094 = vmul.f32 %v1092, 1.442695
    %v1095 = vpow.pop %v1094
    %v1096 = vmul.f32 %v1093, 1.442695
    %v1097 = vpow.pop %v1096
    %v1098 = vadd.f32 %v1095, 1.0
    %v1099 = vadd.f32 %v1097, 1.0
    %v1100 = vrcp.pop %v1098
    %v1101 = vmul.f32 %v1098, %v1100
    %v1102 = vsub.f32 1.0, %v1101
    %v1103 = vmul.f32 %v1100, %v1102
    %v1104 = vadd.f32 %v1100, %v1103
    %vm1105 = vweird.f32 %v1098
    %vm1106 = vweird.f32 %v1100
    %vm1107 = vmor %vm1105, %vm1106
    %v1108 = vsel %vm1107, %v1100, %v1104
    %v1109 = vand.u32 2147483647, %v1098
    %vm1110 = vcmp.eq.f32.partialorder %v1109, 8.507059e+37
    %v1111 = vand.u32 %v1098, 2147483648
    %v1112 = vor.u32 1.1754944e-38, %v1111
    %v1113 = vsel %vm1110, %v1112, %v1108
    %v1114 = vmul.f32 1.0, %v1113
    %v1115 = vrcp.pop %v1099
    %v1116 = vmul.f32 %v1099, %v1115
    %v1117 = vsub.f32 1.0, %v1116
    %v1118 = vmul.f32 %v1115, %v1117
    %v1119 = vadd.f32 %v1115, %v1118
    %vm1120 = vweird.f32 %v1099
    %vm1121 = vweird.f32 %v1115
    %vm1122 = vmor %vm1120, %vm1121
    %v1123 = vsel %vm1122, %v1115, %v1119
    %v1124 = vand.u32 2147483647, %v1099
    %vm1125 = vcmp.eq.f32.partialorder %v1124, 8.507059e+37
    %v1126 = vand.u32 %v1099, 2147483648
    %v1127 = vor.u32 1.1754944e-38, %v1126
    %v1128 = vsel %vm1125, %v1127, %v1123
    %v1129 = vmul.f32 1.0, %v1128
    %v1130 = vtanh.pop %v1090
    %v1131 = vmul.f32 %v1114, %v946
    %v1132 = vmul.f32 %v1114, %v1130
    %1134 = vrot.lane.b32.xlu0 %v1132, 64
    %v1135 = vpop.permute.xlu0 %1134
    %v1137 = vadd.f32 %v1131, %v1135
    %v1138 = vtanh.pop %v1137
    %v1139 = vmul.f32 %v1129, %v1138
    %v1140 = vsel %vm151, %v1049, 0
    %1142 = vmatpush.msra.mxu0 0.0
    %1143 = vmatpush.msra.mxu0 0.0
    %1144 = vmatpush.msra.mxu0 0.0
    %1145 = vmatpush.msra.mxu0 0.0
    %1146 = vmatpush.msra.mxu0 0.0
    %1147 = vmatpush.msra.mxu0 0.0
    %1148 = vmatpush.msra.mxu0 0.0
    %1149 = vmatpush.msra.mxu0 0.0
    %1150 = vmatpush.msra.mxu0 %v116
    %1151 = vmatpush.msra.mxu0 %v114
    %1152 = vmatpush.msra.mxu0 %v112
    %1153 = vmatpush.msra.mxu0 %v110
    %1154 = vmatpush.msra.mxu0 %v108
    %1155 = vmatpush.msra.mxu0 %v106
    %1156 = vmatpush.msra.mxu0 %v104
    %1157 = vmatpush.msra.mxu0 %v102
    %1158 = vmatmul.f32.gmra.mxu0 %v1140
    %v1159 = vpop.f32.mrf.mxu0
    %v1160 = vadd.f32 0.0, %v1159
    %1161 = vdwg.mxu0
    %1162 = vmatpush.msra.mxu0 0.0
    %1163 = vmatpush.msra.mxu0 0.0
    %1164 = vmatpush.msra.mxu0 0.0
    %1165 = vmatpush.msra.mxu0 0.0
    %1166 = vmatpush.msra.mxu0 0.0
    %1167 = vmatpush.msra.mxu0 0.0
    %1168 = vmatpush.msra.mxu0 0.0
    %1169 = vmatpush.msra.mxu0 0.0
    %1170 = vmatpush.msra.mxu0 %v117
    %1171 = vmatpush.msra.mxu0 %v115
    %1172 = vmatpush.msra.mxu0 %v113
    %1173 = vmatpush.msra.mxu0 %v111
    %1174 = vmatpush.msra.mxu0 %v109
    %1175 = vmatpush.msra.mxu0 %v107
    %1176 = vmatpush.msra.mxu0 %v105
    %1177 = vmatpush.msra.mxu0 %v103
    %1178 = vmatmul.f32.gmra.mxu0 %v1140
    %v1179 = vpop.f32.mrf.mxu0
    %v1180 = vadd.f32 0.0, %v1179
    %1181 = vdwg.mxu0
    %v1184 = vrot.slane %v1160, 6
    %v1185 = vrot.slane %v1180, 6
    %v1188 = vadd.f32 %v77, %v1184
    %v1189 = vadd.f32 %v100, %v1185
    %v1190 = vxor.u32 %v1188, 2147483648
    %v1191 = vxor.u32 %v1189, 2147483648
    %v1192 = vmul.f32 %v1190, 1.442695
    %v1193 = vpow.pop %v1192
    %v1194 = vmul.f32 %v1191, 1.442695
    %v1195 = vpow.pop %v1194
    %v1196 = vadd.f32 %v1193, 1.0
    %v1197 = vadd.f32 %v1195, 1.0
    %v1198 = vrcp.pop %v1196
    %v1199 = vmul.f32 %v1196, %v1198
    %v1200 = vsub.f32 1.0, %v1199
    %v1201 = vmul.f32 %v1198, %v1200
    %v1202 = vadd.f32 %v1198, %v1201
    %vm1203 = vweird.f32 %v1196
    %vm1204 = vweird.f32 %v1198
    %vm1205 = vmor %vm1203, %vm1204
    %v1206 = vsel %vm1205, %v1198, %v1202
    %v1207 = vand.u32 2147483647, %v1196
    %vm1208 = vcmp.eq.f32.partialorder %v1207, 8.507059e+37
    %v1209 = vand.u32 %v1196, 2147483648
    %v1210 = vor.u32 1.1754944e-38, %v1209
    %v1211 = vsel %vm1208, %v1210, %v1206
    %v1212 = vmul.f32 1.0, %v1211
    %v1213 = vrcp.pop %v1197
    %v1214 = vmul.f32 %v1197, %v1213
    %v1215 = vsub.f32 1.0, %v1214
    %v1216 = vmul.f32 %v1213, %v1215
    %v1217 = vadd.f32 %v1213, %v1216
    %vm1218 = vweird.f32 %v1197
    %vm1219 = vweird.f32 %v1213
    %vm1220 = vmor %vm1218, %vm1219
    %v1221 = vsel %vm1220, %v1213, %v1217
    %v1222 = vand.u32 2147483647, %v1197
    %vm1223 = vcmp.eq.f32.partialorder %v1222, 8.507059e+37
    %v1224 = vand.u32 %v1197, 2147483648
    %v1225 = vor.u32 1.1754944e-38, %v1224
    %v1226 = vsel %vm1223, %v1225, %v1221
    %v1227 = vmul.f32 1.0, %v1226
    %v1228 = vtanh.pop %v1189
    %v1230 = vrot.slane %v1044, 6
    %v1232 = vmul.f32 %v1212, %v1230
    %v1233 = vmul.f32 %v1212, %v1228
    %1235 = vrot.lane.b32.xlu0 %v1233, 64
    %v1236 = vpop.permute.xlu0 %1235
    %v1238 = vadd.f32 %v1232, %v1236
    %v1239 = vtanh.pop %v1238
    %v1240 = vmul.f32 %v1227, %v1239
    %1242 = vrot.lane.b32.xlu0 %v1240, 64
    %v1243 = vpop.permute.xlu0 %1242
    %v1246 = vrot.slane %v1139, 6
    %v1248 = vsel %vm151, %v1243, %v1246
    %v1250 = vrot.slane %v1248, 2
    %1252 = vmatpush.msra.mxu0 %v148
    %1253 = vmatpush.msra.mxu0 %v146
    %1254 = vmatpush.msra.mxu0 %v144
    %1255 = vmatpush.msra.mxu0 %v142
    %1256 = vmatpush.msra.mxu0 %v140
    %1257 = vmatpush.msra.mxu0 %v138
    %1258 = vmatpush.msra.mxu0 %v136
    %1259 = vmatpush.msra.mxu0 %v134
    %1260 = vmatpush.msra.mxu0 %v132
    %1261 = vmatpush.msra.mxu0 %v130
    %1262 = vmatpush.msra.mxu0 %v128
    %1263 = vmatpush.msra.mxu0 %v126
    %1264 = vmatpush.msra.mxu0 %v124
    %1265 = vmatpush.msra.mxu0 %v122
    %1266 = vmatpush.msra.mxu0 %v120
    %1267 = vmatpush.msra.mxu0 %v118
    %1268 = vmatmul.f32.gmra.mxu0 %v1250
    %v1269 = vpop.f32.mrf.mxu0
    %v1270 = vadd.f32 %v251, %v1269
    %1271 = vdwg.mxu0
    %1272 = vmatpush.msra.mxu0 %v149
    %1273 = vmatpush.msra.mxu0 %v147
    %1274 = vmatpush.msra.mxu0 %v145
    %1275 = vmatpush.msra.mxu0 %v143
    %1276 = vmatpush.msra.mxu0 %v141
    %1277 = vmatpush.msra.mxu0 %v139
    %1278 = vmatpush.msra.mxu0 %v137
    %1279 = vmatpush.msra.mxu0 %v135
    %1280 = vmatpush.msra.mxu0 %v133
    %1281 = vmatpush.msra.mxu0 %v131
    %1282 = vmatpush.msra.mxu0 %v129
    %1283 = vmatpush.msra.mxu0 %v127
    %1284 = vmatpush.msra.mxu0 %v125
    %1285 = vmatpush.msra.mxu0 %v123
    %1286 = vmatpush.msra.mxu0 %v121
    %1287 = vmatpush.msra.mxu0 %v119
    %1288 = vmatmul.f32.gmra.mxu0 %v1250
    %v1289 = vpop.f32.mrf.mxu0
    %v1290 = vadd.f32 %v252, %v1289
    %1291 = vdwg.mxu0
    %v1292 = vxor.u32 %v1270, 2147483648
    %v1293 = vxor.u32 %v1290, 2147483648
    %v1294 = vmul.f32 %v1292, 1.442695
    %v1295 = vpow.pop %v1294
    %v1296 = vmul.f32 %v1293, 1.442695
    %v1297 = vpow.pop %v1296
    %v1298 = vadd.f32 %v1295, 1.0
    %v1299 = vadd.f32 %v1297, 1.0
    %v1300 = vrcp.pop %v1298
    %v1301 = vmul.f32 %v1298, %v1300
    %v1302 = vsub.f32 1.0, %v1301
    %v1303 = vmul.f32 %v1300, %v1302
    %v1304 = vadd.f32 %v1300, %v1303
    %vm1305 = vweird.f32 %v1298
    %vm1306 = vweird.f32 %v1300
    %vm1307 = vmor %vm1305, %vm1306
    %v1308 = vsel %vm1307, %v1300, %v1304
    %v1309 = vand.u32 2147483647, %v1298
    %vm1310 = vcmp.eq.f32.partialorder %v1309, 8.507059e+37
    %v1311 = vand.u32 %v1298, 2147483648
    %v1312 = vor.u32 1.1754944e-38, %v1311
    %v1313 = vsel %vm1310, %v1312, %v1308
    %v1314 = vmul.f32 1.0, %v1313
    %v1315 = vrcp.pop %v1299
    %v1316 = vmul.f32 %v1299, %v1315
    %v1317 = vsub.f32 1.0, %v1316
    %v1318 = vmul.f32 %v1315, %v1317
    %v1319 = vadd.f32 %v1315, %v1318
    %vm1320 = vweird.f32 %v1299
    %vm1321 = vweird.f32 %v1315
    %vm1322 = vmor %vm1320, %vm1321
    %v1323 = vsel %vm1322, %v1315, %v1319
    %v1324 = vand.u32 2147483647, %v1299
    %vm1325 = vcmp.eq.f32.partialorder %v1324, 8.507059e+37
    %v1326 = vand.u32 %v1299, 2147483648
    %v1327 = vor.u32 1.1754944e-38, %v1326
    %v1328 = vsel %vm1325, %v1327, %v1323
    %v1329 = vmul.f32 1.0, %v1328
    %v1330 = vtanh.pop %v1290
    %v1331 = vmul.f32 %v1314, %v1137
    %v1332 = vmul.f32 %v1314, %v1330
    %1334 = vrot.lane.b32.xlu0 %v1332, 64
    %v1335 = vpop.permute.xlu0 %1334
    %v1337 = vadd.f32 %v1331, %v1335
    %v1338 = vtanh.pop %v1337
    %v1339 = vmul.f32 %v1329, %v1338
    %v1340 = vrot.slane %v1240, 2
    %1341 = vrot.lane.b32.xlu0 %v1340, 64
    %v1342 = vpop.permute.xlu0 %1341
    %v1343 = vsel %vm151, %v1342, 0
    %1345 = vmatpush.msra.mxu0 0.0
    %1346 = vmatpush.msra.mxu0 0.0
    %1347 = vmatpush.msra.mxu0 0.0
    %1348 = vmatpush.msra.mxu0 0.0
    %1349 = vmatpush.msra.mxu0 0.0
    %1350 = vmatpush.msra.mxu0 0.0
    %1351 = vmatpush.msra.mxu0 0.0
    %1352 = vmatpush.msra.mxu0 0.0
    %1353 = vmatpush.msra.mxu0 %v116
    %1354 = vmatpush.msra.mxu0 %v114
    %1355 = vmatpush.msra.mxu0 %v112
    %1356 = vmatpush.msra.mxu0 %v110
    %1357 = vmatpush.msra.mxu0 %v108
    %1358 = vmatpush.msra.mxu0 %v106
    %1359 = vmatpush.msra.mxu0 %v104
    %1360 = vmatpush.msra.mxu0 %v102
    %1361 = vmatmul.f32.gmra.mxu0 %v1343
    %v1362 = vpop.f32.mrf.mxu0
    %v1363 = vadd.f32 0.0, %v1362
    %1364 = vdwg.mxu0
    %1365 = vmatpush.msra.mxu0 0.0
    %1366 = vmatpush.msra.mxu0 0.0
    %1367 = vmatpush.msra.mxu0 0.0
    %1368 = vmatpush.msra.mxu0 0.0
    %1369 = vmatpush.msra.mxu0 0.0
    %1370 = vmatpush.msra.mxu0 0.0
    %1371 = vmatpush.msra.mxu0 0.0
    %1372 = vmatpush.msra.mxu0 0.0
    %1373 = vmatpush.msra.mxu0 %v117
    %1374 = vmatpush.msra.mxu0 %v115
    %1375 = vmatpush.msra.mxu0 %v113
    %1376 = vmatpush.msra.mxu0 %v111
    %1377 = vmatpush.msra.mxu0 %v109
    %1378 = vmatpush.msra.mxu0 %v107
    %1379 = vmatpush.msra.mxu0 %v105
    %1380 = vmatpush.msra.mxu0 %v103
    %1381 = vmatmul.f32.gmra.mxu0 %v1343
    %v1382 = vpop.f32.mrf.mxu0
    %v1383 = vadd.f32 0.0, %v1382
    %1384 = vdwg.mxu0
    %v1387 = vrot.slane %v1363, 4
    %v1388 = vrot.slane %v1383, 4
    %v1391 = vadd.f32 %v77, %v1387
    %v1392 = vadd.f32 %v100, %v1388
    %v1393 = vxor.u32 %v1391, 2147483648
    %v1394 = vxor.u32 %v1392, 2147483648
    %v1395 = vmul.f32 %v1393, 1.442695
    %v1396 = vpow.pop %v1395
    %v1397 = vmul.f32 %v1394, 1.442695
    %v1398 = vpow.pop %v1397
    %v1399 = vadd.f32 %v1396, 1.0
    %v1400 = vadd.f32 %v1398, 1.0
    %v1401 = vrcp.pop %v1399
    %v1402 = vmul.f32 %v1399, %v1401
    %v1403 = vsub.f32 1.0, %v1402
    %v1404 = vmul.f32 %v1401, %v1403
    %v1405 = vadd.f32 %v1401, %v1404
    %vm1406 = vweird.f32 %v1399
    %vm1407 = vweird.f32 %v1401
    %vm1408 = vmor %vm1406, %vm1407
    %v1409 = vsel %vm1408, %v1401, %v1405
    %v1410 = vand.u32 2147483647, %v1399
    %vm1411 = vcmp.eq.f32.partialorder %v1410, 8.507059e+37
    %v1412 = vand.u32 %v1399, 2147483648
    %v1413 = vor.u32 1.1754944e-38, %v1412
    %v1414 = vsel %vm1411, %v1413, %v1409
    %v1415 = vmul.f32 1.0, %v1414
    %v1416 = vrcp.pop %v1400
    %v1417 = vmul.f32 %v1400, %v1416
    %v1418 = vsub.f32 1.0, %v1417
    %v1419 = vmul.f32 %v1416, %v1418
    %v1420 = vadd.f32 %v1416, %v1419
    %vm1421 = vweird.f32 %v1400
    %vm1422 = vweird.f32 %v1416
    %vm1423 = vmor %vm1421, %vm1422
    %v1424 = vsel %vm1423, %v1416, %v1420
    %v1425 = vand.u32 2147483647, %v1400
    %vm1426 = vcmp.eq.f32.partialorder %v1425, 8.507059e+37
    %v1427 = vand.u32 %v1400, 2147483648
    %v1428 = vor.u32 1.1754944e-38, %v1427
    %v1429 = vsel %vm1426, %v1428, %v1424
    %v1430 = vmul.f32 1.0, %v1429
    %v1431 = vtanh.pop %v1392
    %v1433 = vrot.slane %v1238, 6
    %v1435 = vmul.f32 %v1415, %v1433
    %v1436 = vmul.f32 %v1415, %v1431
    %1438 = vrot.lane.b32.xlu0 %v1436, 64
    %v1439 = vpop.permute.xlu0 %1438
    %v1441 = vadd.f32 %v1435, %v1439
    %v1442 = vtanh.pop %v1441
    %v1443 = vmul.f32 %v1430, %v1442
    %1445 = vrot.lane.b32.xlu0 %v1443, 64
    %v1446 = vpop.permute.xlu0 %1445
    %v1449 = vrot.slane %v1339, 4
    %v1451 = vsel %vm151, %v1446, %v1449
    %v1453 = vrot.slane %v1451, 4
    %1455 = vmatpush.msra.mxu0 %v148
    %1456 = vmatpush.msra.mxu0 %v146
    %1457 = vmatpush.msra.mxu0 %v144
    %1458 = vmatpush.msra.mxu0 %v142
    %1459 = vmatpush.msra.mxu0 %v140
    %1460 = vmatpush.msra.mxu0 %v138
    %1461 = vmatpush.msra.mxu0 %v136
    %1462 = vmatpush.msra.mxu0 %v134
    %1463 = vmatpush.msra.mxu0 %v132
    %1464 = vmatpush.msra.mxu0 %v130
    %1465 = vmatpush.msra.mxu0 %v128
    %1466 = vmatpush.msra.mxu0 %v126
    %1467 = vmatpush.msra.mxu0 %v124
    %1468 = vmatpush.msra.mxu0 %v122
    %1469 = vmatpush.msra.mxu0 %v120
    %1470 = vmatpush.msra.mxu0 %v118
    %1471 = vmatmul.f32.gmra.mxu0 %v1453
    %v1472 = vpop.f32.mrf.mxu0
    %v1473 = vadd.f32 %v251, %v1472
    %1474 = vdwg.mxu0
    %1475 = vmatpush.msra.mxu0 %v149
    %1476 = vmatpush.msra.mxu0 %v147
    %1477 = vmatpush.msra.mxu0 %v145
    %1478 = vmatpush.msra.mxu0 %v143
    %1479 = vmatpush.msra.mxu0 %v141
    %1480 = vmatpush.msra.mxu0 %v139
    %1481 = vmatpush.msra.mxu0 %v137
    %1482 = vmatpush.msra.mxu0 %v135
    %1483 = vmatpush.msra.mxu0 %v133
    %1484 = vmatpush.msra.mxu0 %v131
    %1485 = vmatpush.msra.mxu0 %v129
    %1486 = vmatpush.msra.mxu0 %v127
    %1487 = vmatpush.msra.mxu0 %v125
    %1488 = vmatpush.msra.mxu0 %v123
    %1489 = vmatpush.msra.mxu0 %v121
    %1490 = vmatpush.msra.mxu0 %v119
    %1491 = vmatmul.f32.gmra.mxu0 %v1453
    %v1492 = vpop.f32.mrf.mxu0
    %v1493 = vadd.f32 %v252, %v1492
    %1494 = vdwg.mxu0
    %v1495 = vxor.u32 %v1473, 2147483648
    %v1496 = vxor.u32 %v1493, 2147483648
    %v1497 = vmul.f32 %v1495, 1.442695
    %v1498 = vpow.pop %v1497
    %v1499 = vmul.f32 %v1496, 1.442695
    %v1500 = vpow.pop %v1499
    %v1501 = vadd.f32 %v1498, 1.0
    %v1502 = vadd.f32 %v1500, 1.0
    %v1503 = vrcp.pop %v1501
    %v1504 = vmul.f32 %v1501, %v1503
    %v1505 = vsub.f32 1.0, %v1504
    %v1506 = vmul.f32 %v1503, %v1505
    %v1507 = vadd.f32 %v1503, %v1506
    %vm1508 = vweird.f32 %v1501
    %vm1509 = vweird.f32 %v1503
    %vm1510 = vmor %vm1508, %vm1509
    %v1511 = vsel %vm1510, %v1503, %v1507
    %v1512 = vand.u32 2147483647, %v1501
    %vm1513 = vcmp.eq.f32.partialorder %v1512, 8.507059e+37
    %v1514 = vand.u32 %v1501, 2147483648
    %v1515 = vor.u32 1.1754944e-38, %v1514
    %v1516 = vsel %vm1513, %v1515, %v1511
    %v1517 = vmul.f32 1.0, %v1516
    %v1518 = vrcp.pop %v1502
    %v1519 = vmul.f32 %v1502, %v1518
    %v1520 = vsub.f32 1.0, %v1519
    %v1521 = vmul.f32 %v1518, %v1520
    %v1522 = vadd.f32 %v1518, %v1521
    %vm1523 = vweird.f32 %v1502
    %vm1524 = vweird.f32 %v1518
    %vm1525 = vmor %vm1523, %vm1524
    %v1526 = vsel %vm1525, %v1518, %v1522
    %v1527 = vand.u32 2147483647, %v1502
    %vm1528 = vcmp.eq.f32.partialorder %v1527, 8.507059e+37
    %v1529 = vand.u32 %v1502, 2147483648
    %v1530 = vor.u32 1.1754944e-38, %v1529
    %v1531 = vsel %vm1528, %v1530, %v1526
    %v1532 = vmul.f32 1.0, %v1531
    %v1533 = vtanh.pop %v1493
    %v1534 = vmul.f32 %v1517, %v1337
    %v1535 = vmul.f32 %v1517, %v1533
    %1537 = vrot.lane.b32.xlu0 %v1535, 64
    %v1538 = vpop.permute.xlu0 %1537
    %v1540 = vadd.f32 %v1534, %v1538
    %v1541 = vtanh.pop %v1540
    %v1542 = vmul.f32 %v1532, %v1541
    %v1543 = vrot.slane %v1443, 4
    %1544 = vrot.lane.b32.xlu0 %v1543, 64
    %v1545 = vpop.permute.xlu0 %1544
    %v1546 = vsel %vm151, %v1545, 0
    %1548 = vmatpush.msra.mxu0 0.0
    %1549 = vmatpush.msra.mxu0 0.0
    %1550 = vmatpush.msra.mxu0 0.0
    %1551 = vmatpush.msra.mxu0 0.0
    %1552 = vmatpush.msra.mxu0 0.0
    %1553 = vmatpush.msra.mxu0 0.0
    %1554 = vmatpush.msra.mxu0 0.0
    %1555 = vmatpush.msra.mxu0 0.0
    %1556 = vmatpush.msra.mxu0 %v116
    %1557 = vmatpush.msra.mxu0 %v114
    %1558 = vmatpush.msra.mxu0 %v112
    %1559 = vmatpush.msra.mxu0 %v110
    %1560 = vmatpush.msra.mxu0 %v108
    %1561 = vmatpush.msra.mxu0 %v106
    %1562 = vmatpush.msra.mxu0 %v104
    %1563 = vmatpush.msra.mxu0 %v102
    %1564 = vmatmul.f32.gmra.mxu0 %v1546
    %v1565 = vpop.f32.mrf.mxu0
    %v1566 = vadd.f32 0.0, %v1565
    %1567 = vdwg.mxu0
    %1568 = vmatpush.msra.mxu0 0.0
    %1569 = vmatpush.msra.mxu0 0.0
    %1570 = vmatpush.msra.mxu0 0.0
    %1571 = vmatpush.msra.mxu0 0.0
    %1572 = vmatpush.msra.mxu0 0.0
    %1573 = vmatpush.msra.mxu0 0.0
    %1574 = vmatpush.msra.mxu0 0.0
    %1575 = vmatpush.msra.mxu0 0.0
    %1576 = vmatpush.msra.mxu0 %v117
    %1577 = vmatpush.msra.mxu0 %v115
    %1578 = vmatpush.msra.mxu0 %v113
    %1579 = vmatpush.msra.mxu0 %v111
    %1580 = vmatpush.msra.mxu0 %v109
    %1581 = vmatpush.msra.mxu0 %v107
    %1582 = vmatpush.msra.mxu0 %v105
    %1583 = vmatpush.msra.mxu0 %v103
    %1584 = vmatmul.f32.gmra.mxu0 %v1546
    %v1585 = vpop.f32.mrf.mxu0
    %v1586 = vadd.f32 0.0, %v1585
    %1587 = vdwg.mxu0
    %v1590 = vrot.slane %v1566, 2
    %v1591 = vrot.slane %v1586, 2
    %v1594 = vadd.f32 %v77, %v1590
    %v1595 = vadd.f32 %v100, %v1591
    %v1596 = vxor.u32 %v1594, 2147483648
    %v1597 = vxor.u32 %v1595, 2147483648
    %v1598 = vmul.f32 %v1596, 1.442695
    %v1599 = vpow.pop %v1598
    %v1600 = vmul.f32 %v1597, 1.442695
    %v1601 = vpow.pop %v1600
    %v1602 = vadd.f32 %v1599, 1.0
    %v1603 = vadd.f32 %v1601, 1.0
    %v1604 = vrcp.pop %v1602
    %v1605 = vmul.f32 %v1602, %v1604
    %v1606 = vsub.f32 1.0, %v1605
    %v1607 = vmul.f32 %v1604, %v1606
    %v1608 = vadd.f32 %v1604, %v1607
    %vm1609 = vweird.f32 %v1602
    %vm1610 = vweird.f32 %v1604
    %vm1611 = vmor %vm1609, %vm1610
    %v1612 = vsel %vm1611, %v1604, %v1608
    %v1613 = vand.u32 2147483647, %v1602
    %vm1614 = vcmp.eq.f32.partialorder %v1613, 8.507059e+37
    %v1615 = vand.u32 %v1602, 2147483648
    %v1616 = vor.u32 1.1754944e-38, %v1615
    %v1617 = vsel %vm1614, %v1616, %v1612
    %v1618 = vmul.f32 1.0, %v1617
    %v1619 = vrcp.pop %v1603
    %v1620 = vmul.f32 %v1603, %v1619
    %v1621 = vsub.f32 1.0, %v1620
    %v1622 = vmul.f32 %v1619, %v1621
    %v1623 = vadd.f32 %v1619, %v1622
    %vm1624 = vweird.f32 %v1603
    %vm1625 = vweird.f32 %v1619
    %vm1626 = vmor %vm1624, %vm1625
    %v1627 = vsel %vm1626, %v1619, %v1623
    %v1628 = vand.u32 2147483647, %v1603
    %vm1629 = vcmp.eq.f32.partialorder %v1628, 8.507059e+37
    %v1630 = vand.u32 %v1603, 2147483648
    %v1631 = vor.u32 1.1754944e-38, %v1630
    %v1632 = vsel %vm1629, %v1631, %v1627
    %v1633 = vmul.f32 1.0, %v1632
    %v1634 = vtanh.pop %v1595
    %v1636 = vrot.slane %v1441, 6
    %v1638 = vmul.f32 %v1618, %v1636
    %v1639 = vmul.f32 %v1618, %v1634
    %1641 = vrot.lane.b32.xlu0 %v1639, 64
    %v1642 = vpop.permute.xlu0 %1641
    %v1644 = vadd.f32 %v1638, %v1642
    %v1645 = vtanh.pop %v1644
    %v1646 = vmul.f32 %v1633, %v1645
    %1648 = vrot.lane.b32.xlu0 %v1646, 64
    %v1649 = vpop.permute.xlu0 %1648
    %v1652 = vrot.slane %v1542, 2
    %v1654 = vsel %vm151, %v1649, %v1652
    %v1656 = vrot.slane %v1654, 6
    %1658 = vmatpush.msra.mxu0 %v148
    %1659 = vmatpush.msra.mxu0 %v146
    %1660 = vmatpush.msra.mxu0 %v144
    %1661 = vmatpush.msra.mxu0 %v142
    %1662 = vmatpush.msra.mxu0 %v140
    %1663 = vmatpush.msra.mxu0 %v138
    %1664 = vmatpush.msra.mxu0 %v136
    %1665 = vmatpush.msra.mxu0 %v134
    %1666 = vmatpush.msra.mxu0 %v132
    %1667 = vmatpush.msra.mxu0 %v130
    %1668 = vmatpush.msra.mxu0 %v128
    %1669 = vmatpush.msra.mxu0 %v126
    %1670 = vmatpush.msra.mxu0 %v124
    %1671 = vmatpush.msra.mxu0 %v122
    %1672 = vmatpush.msra.mxu0 %v120
    %1673 = vmatpush.msra.mxu0 %v118
    %1674 = vmatmul.f32.gmra.mxu0 %v1656
    %v1675 = vpop.f32.mrf.mxu0
    %v1676 = vadd.f32 %v251, %v1675
    %1677 = vdwg.mxu0
    %1678 = vmatpush.msra.mxu0 %v149
    %1679 = vmatpush.msra.mxu0 %v147
    %1680 = vmatpush.msra.mxu0 %v145
    %1681 = vmatpush.msra.mxu0 %v143
    %1682 = vmatpush.msra.mxu0 %v141
    %1683 = vmatpush.msra.mxu0 %v139
    %1684 = vmatpush.msra.mxu0 %v137
    %1685 = vmatpush.msra.mxu0 %v135
    %1686 = vmatpush.msra.mxu0 %v133
    %1687 = vmatpush.msra.mxu0 %v131
    %1688 = vmatpush.msra.mxu0 %v129
    %1689 = vmatpush.msra.mxu0 %v127
    %1690 = vmatpush.msra.mxu0 %v125
    %1691 = vmatpush.msra.mxu0 %v123
    %1692 = vmatpush.msra.mxu0 %v121
    %1693 = vmatpush.msra.mxu0 %v119
    %1694 = vmatmul.f32.gmra.mxu0 %v1656
    %v1695 = vpop.f32.mrf.mxu0
    %v1696 = vadd.f32 %v252, %v1695
    %1697 = vdwg.mxu0
    %v1698 = vxor.u32 %v1676, 2147483648
    %v1699 = vxor.u32 %v1696, 2147483648
    %v1700 = vmul.f32 %v1698, 1.442695
    %v1701 = vpow.pop %v1700
    %v1702 = vmul.f32 %v1699, 1.442695
    %v1703 = vpow.pop %v1702
    %v1704 = vadd.f32 %v1701, 1.0
    %v1705 = vadd.f32 %v1703, 1.0
    %v1706 = vrcp.pop %v1704
    %v1707 = vmul.f32 %v1704, %v1706
    %v1708 = vsub.f32 1.0, %v1707
    %v1709 = vmul.f32 %v1706, %v1708
    %v1710 = vadd.f32 %v1706, %v1709
    %vm1711 = vweird.f32 %v1704
    %vm1712 = vweird.f32 %v1706
    %vm1713 = vmor %vm1711, %vm1712
    %v1714 = vsel %vm1713, %v1706, %v1710
    %v1715 = vand.u32 2147483647, %v1704
    %vm1716 = vcmp.eq.f32.partialorder %v1715, 8.507059e+37
    %v1717 = vand.u32 %v1704, 2147483648
    %v1718 = vor.u32 1.1754944e-38, %v1717
    %v1719 = vsel %vm1716, %v1718, %v1714
    %v1720 = vmul.f32 1.0, %v1719
    %v1721 = vrcp.pop %v1705
    %v1722 = vmul.f32 %v1705, %v1721
    %v1723 = vsub.f32 1.0, %v1722
    %v1724 = vmul.f32 %v1721, %v1723
    %v1725 = vadd.f32 %v1721, %v1724
    %vm1726 = vweird.f32 %v1705
    %vm1727 = vweird.f32 %v1721
    %vm1728 = vmor %vm1726, %vm1727
    %v1729 = vsel %vm1728, %v1721, %v1725
    %v1730 = vand.u32 2147483647, %v1705
    %vm1731 = vcmp.eq.f32.partialorder %v1730, 8.507059e+37
    %v1732 = vand.u32 %v1705, 2147483648
    %v1733 = vor.u32 1.1754944e-38, %v1732
    %v1734 = vsel %vm1731, %v1733, %v1729
    %v1735 = vmul.f32 1.0, %v1734
    %v1736 = vtanh.pop %v1696
    %v1737 = vmul.f32 %v1720, %v1540
    %v1738 = vmul.f32 %v1720, %v1736
    %1740 = vrot.lane.b32.xlu0 %v1738, 64
    %v1741 = vpop.permute.xlu0 %1740
    %v1743 = vadd.f32 %v1737, %v1741
    %v1744 = vtanh.pop %v1743
    %v1745 = vmul.f32 %v1735, %v1744
    %1747 = vrot.lane.b32.xlu0 %v1745, 64
    %v1748 = vpop.permute.xlu0 %1747
    %vm1750 = vcmask 517120
    %1751 = vst.msk [vmem:[#allocation4] sm:$0x3] %vm1750, %v1748
    %v1752 = vld [vmem:[%s6] sm:$0xff]
    %v1753 = vld [vmem:[%s6 + $0x8] sm:$0xff]
    %v1754 = vld [vmem:[%s6 + $0x10] sm:$0xff]
    %v1755 = vld [vmem:[%s6 + $0x18] sm:$0xff]
    %v1756 = vld [vmem:[%s6 + $0x20] sm:$0xff]
    %v1757 = vld [vmem:[%s6 + $0x28] sm:$0xff]
    %v1758 = vld [vmem:[%s6 + $0x30] sm:$0xff]
    %v1759 = vld [vmem:[%s6 + $0x38] sm:$0xff]
    %v1760 = vld [vmem:[%s7] sm:$0x1]
    %v1762 = vperm.slane %v1760, 0
    %v1764 = vsel %vm151, %v1748, 0
    %1766 = vmatpush.msra.mxu0 0.0
    %1767 = vmatpush.msra.mxu0 0.0
    %1768 = vmatpush.msra.mxu0 0.0
    %1769 = vmatpush.msra.mxu0 0.0
    %1770 = vmatpush.msra.mxu0 0.0
    %1771 = vmatpush.msra.mxu0 0.0
    %1772 = vmatpush.msra.mxu0 0.0
    %1773 = vmatpush.msra.mxu0 0.0
    %1774 = vmatpush.msra.mxu0 %v1759
    %1775 = vmatpush.msra.mxu0 %v1758
    %1776 = vmatpush.msra.mxu0 %v1757
    %1777 = vmatpush.msra.mxu0 %v1756
    %1778 = vmatpush.msra.mxu0 %v1755
    %1779 = vmatpush.msra.mxu0 %v1754
    %1780 = vmatpush.msra.mxu0 %v1753
    %1781 = vmatpush.msra.mxu0 %v1752
    %1782 = vmatmul.f32.gmra.mxu0 %v1764
    %v1783 = vpop.f32.mrf.mxu0
    %v1784 = vadd.f32 %v1762, %v1783
    %1785 = vdwg.mxu0
    %vm1786 = vcmask 74752
    %1787 = vst.msk [vmem:[#allocation2] sm:$0x3] %vm1786, %v1784
    // Predicated region
    $region34: #{lstm_forward.1} parent=1 // pred_check
      _
    $region35: #{lstm_forward.1} parent=1 // pred_check_branch
      %1789 = sbr.rel (0) target = $region37
    $region36: #{lstm_forward.1} parent=1 // pred_region
      %1791 = vsyncadd [#allocation3], 0
      %s1793 = sshll.u32 [#allocation2], 4
      %s1794 = int_to_ptr.vmem [resolvable:$true] %s1793
      %s1795 = sshll.u32 %s8, 4
      %s1796 = int_to_ptr.hbm [resolvable:$true] %s1795
      %1798 = dma.vmem_to_hbm [thread:$0]  %s1794, 32, %s1796, [#allocation3]
    $region37: #{lstm_forward.1} parent=1 // pred_fallthru
      _
    // Predicated region
    $region38: #{lstm_forward.1} parent=1 // pred_check
      _
    $region39: #{lstm_forward.1} parent=1 // pred_check_branch
      %1800 = sbr.rel (0) target = $region41
    $region40: #{lstm_forward.1} parent=1 // pred_region
      %1802 = vsyncadd [#allocation5], 0
      %s1804 = sshll.u32 [#allocation4], 4
      %s1805 = int_to_ptr.vmem [resolvable:$true] %s1804
      %s1806 = sshll.u32 %s9, 4
      %s1807 = int_to_ptr.hbm [resolvable:$true] %s1806
      %1809 = dma.vmem_to_hbm [thread:$0]  %s1805, 32, %s1807, [#allocation5]
    $region41: #{lstm_forward.1} parent=1 // pred_fallthru
      _
    // Predicated region
    $region42: #{lstm_forward.1} parent=1 // pred_check
      _
    $region43: #{lstm_forward.1} parent=1 // pred_check_branch
      %1811 = sbr.rel (0) target = $region45
    $region44: #{lstm_forward.1} parent=1 // pred_region
      %1813 = dma.done [#allocation3], 32
    $region45: #{lstm_forward.1} parent=1 // pred_fallthru
      _
    // Predicated region
    $region46: #{lstm_forward.1} parent=1 // pred_check
      _
    $region47: #{lstm_forward.1} parent=1 // pred_check_branch
      %1815 = sbr.rel (0) target = $region49
    $region48: #{lstm_forward.1} parent=1 // pred_region
      %1817 = dma.done [#allocation5], 32
    $region49: #{lstm_forward.1} parent=1 // pred_fallthru
      _
    %1818 = vsyncpa [#allocation3], 1
    %1819 = vsyncpa [#allocation5], 1

</llo_original>
